<compile_context>
chip_gen: v5e
topology: v5e:2x2
jax: 0.10.0
libtpu: 0.0.40
codegen_flags: <defaults>
</compile_context>

<pallas_src>
import functools
import numpy as np
import jax
import jax.numpy as jnp
from jax.experimental import pallas as pl
from jax.experimental.pallas import tpu as pltpu

D_NEIGH = 10   # neighborhood width hard-coded inside the torch transform_input()
LANE = 128     # TPU lane width; feature dims are zero-padded to this


def _round_up(x, m):
    return (x + m - 1) // m * m


# ----------------------------------------------------------------------------
# Fused Pallas kernel: gather -> project -> attention -> softmax -> aggregate -> ELU
# ----------------------------------------------------------------------------
def _gat_fused_kernel(idx_ref, h_ref, w_ref, out_ref, *, n, d, fout, alpha, final):
    """Shapes (feature dims LANE-padded):
         idx_ref : (n*d, 1)   int32  neighbor-node id per (node, slot); == n -> empty slot
         h_ref   : (n, fin_p) f32    node features
         w_ref   : (fin_p, fp) f32   projection weight
         out_ref : (n*d, fp)  f32    lane-dense output slab; wrapper slices [:, :fout]
    """
    nd = n * d
    fp = out_ref.shape[-1]

    # ---- projection (HW_q == HW_k == HW_v == h @ W, computed once on n rows) ----
    hw_nodes = jnp.dot(h_ref[...], w_ref[...], preferred_element_type=jnp.float32)  # (n, fp)

    # ---- neighborhood gather as a one-hot MXU matmul (sentinel idx == n -> zero row) ----
    node_ids = jax.lax.broadcasted_iota(jnp.int32, (nd, n), 1)
    onehot = (idx_ref[...] == node_ids).astype(jnp.float32)                         # (nd, n)
    hw = jnp.dot(onehot, hw_nodes, preferred_element_type=jnp.float32)              # (nd, fp)
    hw_l = hw[:, :fout]                                                             # (nd, fout)

    # ---- attention scores: att[b,i,j] = sum_k HW[b,i,k] * HW[j,k,b]  (torch HW_q @ HW_k.T)
    # Done without any 3-D transpose: for each j, R_j = HW_flat @ HW[j] gives
    # R_j[(b,i), b'] = sum_k HW[b,i,k] * HW[j,k,b']; the b' == b diagonal is picked by a mask.
    row_ids = jax.lax.broadcasted_iota(jnp.int32, (nd, fp), 0)
    col_ids = jax.lax.broadcasted_iota(jnp.int32, (nd, fp), 1)
    diag_mask = jnp.logical_and(col_ids * d <= row_ids,
                                row_ids < (col_ids + 1) * d).astype(jnp.float32)    # b' == r // d
    lane_ids = jax.lax.broadcasted_iota(jnp.int32, (nd, n), 1)

    att = jnp.zeros((nd, n), jnp.float32)
    for j in range(n):                                      # static unroll (n == 10)
        m_j = hw[j * d:(j + 1) * d, :]                      # (d, fp) = HW[j, k, :]
        r_j = jnp.dot(hw_l, m_j, preferred_element_type=jnp.float32)                # (nd, fp)
        col_j = jnp.sum(r_j * diag_mask, axis=1, keepdims=True)                     # (nd, 1)
        att = att + col_j * (lane_ids == j).astype(jnp.float32)

    # LeakyReLU(alpha)
    att = jnp.where(att > 0, att, alpha * att)

    # ---- per source node block: softmax over dim=1 (slot axis), aggregate, activation ----
    for b in range(n):                                      # static unroll (n == 10)
        att_b = att[b * d:(b + 1) * d, :]                   # (d, n) = att[b, i, j]
        m = jnp.max(att_b, axis=0, keepdims=True)
        e = jnp.exp(att_b - m)
        s = jnp.sum(e, axis=0, keepdims=True)
        p = e * pl.reciprocal(s, approx=True)               # softmax over i
        # TODO(synk): F.dropout(attention, p) with p>0 uses the torch RNG and cannot be
        #             bit-matched; this demo runs with dropout=0.0 (identity).
        hw_b = hw[b * d:(b + 1) * d, :]                     # (d, fp) = HW[b, j, :]
        hp_b = jnp.dot(p, hw_b, preferred_element_type=jnp.float32)                 # (d, fp)
        if final:
            out_b = hp_b
        else:                                               # ELU (alpha = 1.0)
            out_b = jnp.where(hp_b > 0, hp_b, jnp.exp(jnp.minimum(hp_b, 0.0)) - 1.0)
        out_ref[b * d:(b + 1) * d, :] = out_b               # lane-dense (fp-wide) stores


# ----------------------------------------------------------------------------
# Wrapper glue (index-table build, padding, pallas_call)
# ----------------------------------------------------------------------------
def build_gather_index(edge_x, edge_y, n):
    """For each (src node, slot) return the neighbor whose features fill that slot,
    or the sentinel `n` for empty slots. O(M) scan mirroring the torch scatter loop."""
    def step(counts, edge):
        src, dst = edge
        slot = counts[src]
        return counts.at[src].add(1), (src, slot, dst)

    counts0 = jnp.zeros((n,), jnp.int32)
    _, (srcs, slots, dsts) = jax.lax.scan(
        step, counts0, (edge_x.astype(jnp.int32), edge_y.astype(jnp.int32)))
    idx = jnp.full((n, D_NEIGH), n, dtype=jnp.int32)
    idx = idx.at[srcs, slots].set(dsts)
    return idx.reshape(n * D_NEIGH, 1)


def gat_layer_forward(h, edge_feats, edge_indices, adj, params,
                      *, alpha=0.2, dropout=0.0, final=False, training=True):
    # adj is unused by the torch forward; dropout=0.0 in this demo (see TODO in the kernel).
    # We = edge_feats @ W_edge is dead compute in the torch forward (never consumed) -> removed.
    del edge_feats, adj, dropout, training
    W, _W_edge, _a = params            # W_edge / a are dead parameters in the forward
    edge_x, edge_y = edge_indices
    N, Fin = h.shape
    Fout = W.shape[1]
    assert N == Fout == D_NEIGH, "torch.matmul(HW_q, HW_k.T) requires N == D == out_feats"

    fin_p = _round_up(max(Fin, 1), LANE)
    fout_p = _round_up(max(Fout, 1), LANE)
    idx = build_gather_index(edge_x, edge_y, N)                        # (N*D, 1) int32
    h_pad = jnp.zeros((N, fin_p), jnp.float32).at[:, :Fin].set(h)
    w_pad = jnp.zeros((fin_p, fout_p), jnp.float32).at[:Fin, :Fout].set(W)

    vmem = pl.BlockSpec(memory_space=pltpu.MemorySpace.VMEM)
    out_flat = pl.pallas_call(
        functools.partial(_gat_fused_kernel, n=N, d=D_NEIGH, fout=Fout,
                          alpha=alpha, final=final),
        out_shape=jax.ShapeDtypeStruct((N * D_NEIGH, fout_p), jnp.float32),
        in_specs=[vmem, vmem, vmem],
        out_specs=vmem,
    )(idx, h_pad, w_pad)
    return out_flat[:, :Fout].reshape(N, D_NEIGH, Fout)


# ----------------------------------------------------------------------------
# Pure-JAX reference (mirrors the torch code verbatim) for a sanity check
# ----------------------------------------------------------------------------
def transform_input_ref(h, edge_x, edge_y):
    """Direct jnp translation of the torch scatter loop (reference only)."""
    N, Fin = h.shape
    M = edge_x.shape[0]
    eq = edge_x[:, None] == edge_x[None, :]
    earlier = jnp.tril(jnp.ones((M, M), dtype=bool), k=-1)
    pos = jnp.sum(eq & earlier, axis=1).astype(jnp.int32)
    inp = jnp.zeros((N, D_NEIGH, Fin), dtype=jnp.float32)
    return inp.at[edge_x, pos, :].set(h[edge_y])


def ref_forward(h, edge_feats, edge_indices, params, *, alpha=0.2, final=False):
    W, W_edge, _a = params
    edge_x, edge_y = edge_indices
    _We = edge_feats @ W_edge                     # dead compute, mirrors the torch code
    hn = transform_input_ref(h, edge_x, edge_y)
    HWq = hn @ W
    HWk = hn @ W
    HWv = hn @ W
    att = jnp.matmul(HWq, jnp.transpose(HWk, (2, 1, 0)))   # torch .T reverses all dims
    att = jnp.where(att > 0, att, alpha * att)
    att = jax.nn.softmax(att, axis=1)
    hp = jnp.matmul(att, HWv)
    return hp if final else jnp.where(hp > 0, hp, jnp.exp(jnp.minimum(hp, 0.0)) - 1.0)


def xavier_uniform(key, shape, gain=1.414):
    fan_in, fan_out = shape[0], shape[1]
    bound = gain * np.sqrt(6.0 / (fan_in + fan_out))
    return jax.random.uniform(key, shape, jnp.float32, -bound, bound)


if __name__ == "__main__":
    key = jax.random.PRNGKey(0)
    k_h, k_ef, k_w, k_we, k_a = jax.random.split(key, 5)

    N, Fin, Fout, E = 10, 16, 10, 8   # N == Fout == D_NEIGH is required (see assert above)
    deg = 3                           # per-node out-degree (<= D_NEIGH)
    M = N * deg

    # deterministic edge list: node i -> (i+1)%N, (i+2)%N, (i+3)%N
    edge_x = jnp.asarray(np.repeat(np.arange(N), deg), dtype=jnp.int32)
    edge_y = jnp.asarray((np.repeat(np.arange(N), deg)
                          + np.tile(np.arange(1, deg + 1), N)) % N, dtype=jnp.int32)

    h = jax.random.normal(k_h, (N, Fin), jnp.float32)
    edge_feats = jax.random.normal(k_ef, (M, E), jnp.float32)
    adj = jnp.ones((N, N), jnp.float32)   # unused by the forward pass

    params = (
        xavier_uniform(k_w, (Fin, Fout), gain=1.414),    # W
        xavier_uniform(k_we, (E, E), gain=1.414),        # W_edge (dead in forward)
        xavier_uniform(k_a, (E, 1), gain=1.414),         # a      (dead in forward)
    )

    out = gat_layer_forward(h, edge_feats, (edge_x, edge_y), adj, params,
                            alpha=0.2, dropout=0.0, final=False, training=True)
    out = jax.block_until_ready(out)

    ref = jax.block_until_ready(
        ref_forward(h, edge_feats, (edge_x, edge_y), params, alpha=0.2, final=False))

    assert out.shape == (N, D_NEIGH, Fout)
    np.testing.assert_allclose(np.asarray(out), np.asarray(ref), rtol=1e-2, atol=1e-2)
    print("KERNEL_OK")
</pallas_src>

<mosaic_0001>
module attributes {stable_mosaic.version = 11 : i64} {
  func.func @_gat_fused_kernel(%arg0: memref<100x1xi32, #tpu.memory_space<vmem>>, %arg1: memref<10x128xf32, #tpu.memory_space<vmem>>, %arg2: memref<128x128xf32, #tpu.memory_space<vmem>>, %arg3: memref<100x128xf32, #tpu.memory_space<vmem>>) attributes {dimension_semantics = [], scalar_prefetch = 0 : i64, scratch_operands = 0 : i64, tpu.core_type = #tpu.core_type<tc>} {
    %c0 = arith.constant 0 : index
    %c0_0 = arith.constant 0 : index
    %0 = vector.load %arg1[%c0, %c0_0] : memref<10x128xf32, #tpu.memory_space<vmem>>, vector<10x128xf32>
    %c0_1 = arith.constant 0 : index
    %c0_2 = arith.constant 0 : index
    %1 = vector.load %arg2[%c0_1, %c0_2] : memref<128x128xf32, #tpu.memory_space<vmem>>, vector<128x128xf32>
    %cst = arith.constant dense<0.000000e+00> : vector<10x128xf32>
    %2 = tpu.matmul %0, %1, %cst {dimension_numbers = #tpu.dot_dimension_numbers<[1], [0], [0], [1], [0, 0, 1, 1], [], []>} : vector<10x128xf32>, vector<128x128xf32>, vector<10x128xf32> -> vector<10x128xf32>
    %3 = tpu.iota {dimensions = array<i32: 1>} : vector<100x10xi32>
    %c0_3 = arith.constant 0 : index
    %c0_4 = arith.constant 0 : index
    %4 = vector.load %arg0[%c0_3, %c0_4] : memref<100x1xi32, #tpu.memory_space<vmem>>, vector<100x1xi32>
    %5 = vector.broadcast %4 : vector<100x1xi32> to vector<100x10xi32>
    %6 = arith.cmpi eq, %5, %3 : vector<100x10xi32>
    %7 = arith.extui %6 : vector<100x10xi1> to vector<100x10xi32>
    %8 = arith.sitofp %7 : vector<100x10xi32> to vector<100x10xf32>
    %cst_5 = arith.constant dense<0.000000e+00> : vector<100x128xf32>
    %9 = tpu.matmul %8, %2, %cst_5 {dimension_numbers = #tpu.dot_dimension_numbers<[1], [0], [0], [1], [0, 0, 1, 1], [], []>} : vector<100x10xf32>, vector<10x128xf32>, vector<100x128xf32> -> vector<100x128xf32>
    %10 = vector.extract_strided_slice %9 {offsets = [0, 0], sizes = [100, 10], strides = [1, 1]} : vector<100x128xf32> to vector<100x10xf32>
    %11 = tpu.iota {dimensions = array<i32: 0>} : vector<100x128xi32>
    %12 = tpu.iota {dimensions = array<i32: 1>} : vector<100x128xi32>
    %c10_i32 = arith.constant 10 : i32
    %13 = vector.broadcast %c10_i32 : i32 to vector<100x128xi32>
    %14 = arith.muli %12, %13 : vector<100x128xi32>
    %15 = arith.cmpi sle, %14, %11 : vector<100x128xi32>
    %c1_i32 = arith.constant 1 : i32
    %16 = vector.broadcast %c1_i32 : i32 to vector<100x128xi32>
    %17 = arith.addi %12, %16 : vector<100x128xi32>
    %c10_i32_6 = arith.constant 10 : i32
    %18 = vector.broadcast %c10_i32_6 : i32 to vector<100x128xi32>
    %19 = arith.muli %17, %18 : vector<100x128xi32>
    %20 = arith.cmpi slt, %11, %19 : vector<100x128xi32>
    %21 = arith.andi %15, %20 : vector<100x128xi1>
    %22 = arith.extui %21 : vector<100x128xi1> to vector<100x128xi32>
    %23 = arith.sitofp %22 : vector<100x128xi32> to vector<100x128xf32>
    %24 = tpu.iota {dimensions = array<i32: 1>} : vector<100x10xi32>
    %cst_7 = arith.constant 0.000000e+00 : f32
    %25 = vector.broadcast %cst_7 : f32 to vector<100x10xf32>
    %26 = vector.extract_strided_slice %9 {offsets = [0, 0], sizes = [10, 128], strides = [1, 1]} : vector<100x128xf32> to vector<10x128xf32>
    %cst_8 = arith.constant dense<0.000000e+00> : vector<100x128xf32>
    %27 = tpu.matmul %10, %26, %cst_8 {dimension_numbers = #tpu.dot_dimension_numbers<[1], [0], [0], [1], [0, 0, 1, 1], [], []>} : vector<100x10xf32>, vector<10x128xf32>, vector<100x128xf32> -> vector<100x128xf32>
    %28 = arith.mulf %27, %23 : vector<100x128xf32>
    %cst_9 = arith.constant dense<0.000000e+00> : vector<100xf32>
    %29 = vector.multi_reduction <add>, %28, %cst_9 [1] : vector<100x128xf32> to vector<100xf32>
    %30 = vector.shape_cast %29 : vector<100xf32> to vector<100x1xf32>
    %c0_i32 = arith.constant 0 : i32
    %31 = vector.broadcast %c0_i32 : i32 to vector<100x10xi32>
    %32 = arith.cmpi eq, %24, %31 : vector<100x10xi32>
    %33 = arith.extui %32 : vector<100x10xi1> to vector<100x10xi32>
    %34 = arith.sitofp %33 : vector<100x10xi32> to vector<100x10xf32>
    %35 = vector.broadcast %30 : vector<100x1xf32> to vector<100x10xf32>
    %36 = arith.mulf %35, %34 : vector<100x10xf32>
    %37 = arith.addf %25, %36 : vector<100x10xf32>
    %38 = vector.extract_strided_slice %9 {offsets = [10, 0], sizes = [10, 128], strides = [1, 1]} : vector<100x128xf32> to vector<10x128xf32>
    %cst_10 = arith.constant dense<0.000000e+00> : vector<100x128xf32>
    %39 = tpu.matmul %10, %38, %cst_10 {dimension_numbers = #tpu.dot_dimension_numbers<[1], [0], [0], [1], [0, 0, 1, 1], [], []>} : vector<100x10xf32>, vector<10x128xf32>, vector<100x128xf32> -> vector<100x128xf32>
    %40 = arith.mulf %39, %23 : vector<100x128xf32>
    %cst_11 = arith.constant dense<0.000000e+00> : vector<100xf32>
    %41 = vector.multi_reduction <add>, %40, %cst_11 [1] : vector<100x128xf32> to vector<100xf32>
    %42 = vector.shape_cast %41 : vector<100xf32> to vector<100x1xf32>
    %c1_i32_12 = arith.constant 1 : i32
    %43 = vector.broadcast %c1_i32_12 : i32 to vector<100x10xi32>
    %44 = arith.cmpi eq, %24, %43 : vector<100x10xi32>
    %45 = arith.extui %44 : vector<100x10xi1> to vector<100x10xi32>
    %46 = arith.sitofp %45 : vector<100x10xi32> to vector<100x10xf32>
    %47 = vector.broadcast %42 : vector<100x1xf32> to vector<100x10xf32>
    %48 = arith.mulf %47, %46 : vector<100x10xf32>
    %49 = arith.addf %37, %48 : vector<100x10xf32>
    %50 = vector.extract_strided_slice %9 {offsets = [20, 0], sizes = [10, 128], strides = [1, 1]} : vector<100x128xf32> to vector<10x128xf32>
    %cst_13 = arith.constant dense<0.000000e+00> : vector<100x128xf32>
    %51 = tpu.matmul %10, %50, %cst_13 {dimension_numbers = #tpu.dot_dimension_numbers<[1], [0], [0], [1], [0, 0, 1, 1], [], []>} : vector<100x10xf32>, vector<10x128xf32>, vector<100x128xf32> -> vector<100x128xf32>
    %52 = arith.mulf %51, %23 : vector<100x128xf32>
    %cst_14 = arith.constant dense<0.000000e+00> : vector<100xf32>
    %53 = vector.multi_reduction <add>, %52, %cst_14 [1] : vector<100x128xf32> to vector<100xf32>
    %54 = vector.shape_cast %53 : vector<100xf32> to vector<100x1xf32>
    %c2_i32 = arith.constant 2 : i32
    %55 = vector.broadcast %c2_i32 : i32 to vector<100x10xi32>
    %56 = arith.cmpi eq, %24, %55 : vector<100x10xi32>
    %57 = arith.extui %56 : vector<100x10xi1> to vector<100x10xi32>
    %58 = arith.sitofp %57 : vector<100x10xi32> to vector<100x10xf32>
    %59 = vector.broadcast %54 : vector<100x1xf32> to vector<100x10xf32>
    %60 = arith.mulf %59, %58 : vector<100x10xf32>
    %61 = arith.addf %49, %60 : vector<100x10xf32>
    %62 = vector.extract_strided_slice %9 {offsets = [30, 0], sizes = [10, 128], strides = [1, 1]} : vector<100x128xf32> to vector<10x128xf32>
    %cst_15 = arith.constant dense<0.000000e+00> : vector<100x128xf32>
    %63 = tpu.matmul %10, %62, %cst_15 {dimension_numbers = #tpu.dot_dimension_numbers<[1], [0], [0], [1], [0, 0, 1, 1], [], []>} : vector<100x10xf32>, vector<10x128xf32>, vector<100x128xf32> -> vector<100x128xf32>
    %64 = arith.mulf %63, %23 : vector<100x128xf32>
    %cst_16 = arith.constant dense<0.000000e+00> : vector<100xf32>
    %65 = vector.multi_reduction <add>, %64, %cst_16 [1] : vector<100x128xf32> to vector<100xf32>
    %66 = vector.shape_cast %65 : vector<100xf32> to vector<100x1xf32>
    %c3_i32 = arith.constant 3 : i32
    %67 = vector.broadcast %c3_i32 : i32 to vector<100x10xi32>
    %68 = arith.cmpi eq, %24, %67 : vector<100x10xi32>
    %69 = arith.extui %68 : vector<100x10xi1> to vector<100x10xi32>
    %70 = arith.sitofp %69 : vector<100x10xi32> to vector<100x10xf32>
    %71 = vector.broadcast %66 : vector<100x1xf32> to vector<100x10xf32>
    %72 = arith.mulf %71, %70 : vector<100x10xf32>
    %73 = arith.addf %61, %72 : vector<100x10xf32>
    %74 = vector.extract_strided_slice %9 {offsets = [40, 0], sizes = [10, 128], strides = [1, 1]} : vector<100x128xf32> to vector<10x128xf32>
    %cst_17 = arith.constant dense<0.000000e+00> : vector<100x128xf32>
    %75 = tpu.matmul %10, %74, %cst_17 {dimension_numbers = #tpu.dot_dimension_numbers<[1], [0], [0], [1], [0, 0, 1, 1], [], []>} : vector<100x10xf32>, vector<10x128xf32>, vector<100x128xf32> -> vector<100x128xf32>
    %76 = arith.mulf %75, %23 : vector<100x128xf32>
    %cst_18 = arith.constant dense<0.000000e+00> : vector<100xf32>
    %77 = vector.multi_reduction <add>, %76, %cst_18 [1] : vector<100x128xf32> to vector<100xf32>
    %78 = vector.shape_cast %77 : vector<100xf32> to vector<100x1xf32>
    %c4_i32 = arith.constant 4 : i32
    %79 = vector.broadcast %c4_i32 : i32 to vector<100x10xi32>
    %80 = arith.cmpi eq, %24, %79 : vector<100x10xi32>
    %81 = arith.extui %80 : vector<100x10xi1> to vector<100x10xi32>
    %82 = arith.sitofp %81 : vector<100x10xi32> to vector<100x10xf32>
    %83 = vector.broadcast %78 : vector<100x1xf32> to vector<100x10xf32>
    %84 = arith.mulf %83, %82 : vector<100x10xf32>
    %85 = arith.addf %73, %84 : vector<100x10xf32>
    %86 = vector.extract_strided_slice %9 {offsets = [50, 0], sizes = [10, 128], strides = [1, 1]} : vector<100x128xf32> to vector<10x128xf32>
    %cst_19 = arith.constant dense<0.000000e+00> : vector<100x128xf32>
    %87 = tpu.matmul %10, %86, %cst_19 {dimension_numbers = #tpu.dot_dimension_numbers<[1], [0], [0], [1], [0, 0, 1, 1], [], []>} : vector<100x10xf32>, vector<10x128xf32>, vector<100x128xf32> -> vector<100x128xf32>
    %88 = arith.mulf %87, %23 : vector<100x128xf32>
    %cst_20 = arith.constant dense<0.000000e+00> : vector<100xf32>
    %89 = vector.multi_reduction <add>, %88, %cst_20 [1] : vector<100x128xf32> to vector<100xf32>
    %90 = vector.shape_cast %89 : vector<100xf32> to vector<100x1xf32>
    %c5_i32 = arith.constant 5 : i32
    %91 = vector.broadcast %c5_i32 : i32 to vector<100x10xi32>
    %92 = arith.cmpi eq, %24, %91 : vector<100x10xi32>
    %93 = arith.extui %92 : vector<100x10xi1> to vector<100x10xi32>
    %94 = arith.sitofp %93 : vector<100x10xi32> to vector<100x10xf32>
    %95 = vector.broadcast %90 : vector<100x1xf32> to vector<100x10xf32>
    %96 = arith.mulf %95, %94 : vector<100x10xf32>
    %97 = arith.addf %85, %96 : vector<100x10xf32>
    %98 = vector.extract_strided_slice %9 {offsets = [60, 0], sizes = [10, 128], strides = [1, 1]} : vector<100x128xf32> to vector<10x128xf32>
    %cst_21 = arith.constant dense<0.000000e+00> : vector<100x128xf32>
    %99 = tpu.matmul %10, %98, %cst_21 {dimension_numbers = #tpu.dot_dimension_numbers<[1], [0], [0], [1], [0, 0, 1, 1], [], []>} : vector<100x10xf32>, vector<10x128xf32>, vector<100x128xf32> -> vector<100x128xf32>
    %100 = arith.mulf %99, %23 : vector<100x128xf32>
    %cst_22 = arith.constant dense<0.000000e+00> : vector<100xf32>
    %101 = vector.multi_reduction <add>, %100, %cst_22 [1] : vector<100x128xf32> to vector<100xf32>
    %102 = vector.shape_cast %101 : vector<100xf32> to vector<100x1xf32>
    %c6_i32 = arith.constant 6 : i32
    %103 = vector.broadcast %c6_i32 : i32 to vector<100x10xi32>
    %104 = arith.cmpi eq, %24, %103 : vector<100x10xi32>
    %105 = arith.extui %104 : vector<100x10xi1> to vector<100x10xi32>
    %106 = arith.sitofp %105 : vector<100x10xi32> to vector<100x10xf32>
    %107 = vector.broadcast %102 : vector<100x1xf32> to vector<100x10xf32>
    %108 = arith.mulf %107, %106 : vector<100x10xf32>
    %109 = arith.addf %97, %108 : vector<100x10xf32>
    %110 = vector.extract_strided_slice %9 {offsets = [70, 0], sizes = [10, 128], strides = [1, 1]} : vector<100x128xf32> to vector<10x128xf32>
    %cst_23 = arith.constant dense<0.000000e+00> : vector<100x128xf32>
    %111 = tpu.matmul %10, %110, %cst_23 {dimension_numbers = #tpu.dot_dimension_numbers<[1], [0], [0], [1], [0, 0, 1, 1], [], []>} : vector<100x10xf32>, vector<10x128xf32>, vector<100x128xf32> -> vector<100x128xf32>
    %112 = arith.mulf %111, %23 : vector<100x128xf32>
    %cst_24 = arith.constant dense<0.000000e+00> : vector<100xf32>
    %113 = vector.multi_reduction <add>, %112, %cst_24 [1] : vector<100x128xf32> to vector<100xf32>
    %114 = vector.shape_cast %113 : vector<100xf32> to vector<100x1xf32>
    %c7_i32 = arith.constant 7 : i32
    %115 = vector.broadcast %c7_i32 : i32 to vector<100x10xi32>
    %116 = arith.cmpi eq, %24, %115 : vector<100x10xi32>
    %117 = arith.extui %116 : vector<100x10xi1> to vector<100x10xi32>
    %118 = arith.sitofp %117 : vector<100x10xi32> to vector<100x10xf32>
    %119 = vector.broadcast %114 : vector<100x1xf32> to vector<100x10xf32>
    %120 = arith.mulf %119, %118 : vector<100x10xf32>
    %121 = arith.addf %109, %120 : vector<100x10xf32>
    %122 = vector.extract_strided_slice %9 {offsets = [80, 0], sizes = [10, 128], strides = [1, 1]} : vector<100x128xf32> to vector<10x128xf32>
    %cst_25 = arith.constant dense<0.000000e+00> : vector<100x128xf32>
    %123 = tpu.matmul %10, %122, %cst_25 {dimension_numbers = #tpu.dot_dimension_numbers<[1], [0], [0], [1], [0, 0, 1, 1], [], []>} : vector<100x10xf32>, vector<10x128xf32>, vector<100x128xf32> -> vector<100x128xf32>
    %124 = arith.mulf %123, %23 : vector<100x128xf32>
    %cst_26 = arith.constant dense<0.000000e+00> : vector<100xf32>
    %125 = vector.multi_reduction <add>, %124, %cst_26 [1] : vector<100x128xf32> to vector<100xf32>
    %126 = vector.shape_cast %125 : vector<100xf32> to vector<100x1xf32>
    %c8_i32 = arith.constant 8 : i32
    %127 = vector.broadcast %c8_i32 : i32 to vector<100x10xi32>
    %128 = arith.cmpi eq, %24, %127 : vector<100x10xi32>
    %129 = arith.extui %128 : vector<100x10xi1> to vector<100x10xi32>
    %130 = arith.sitofp %129 : vector<100x10xi32> to vector<100x10xf32>
    %131 = vector.broadcast %126 : vector<100x1xf32> to vector<100x10xf32>
    %132 = arith.mulf %131, %130 : vector<100x10xf32>
    %133 = arith.addf %121, %132 : vector<100x10xf32>
    %134 = vector.extract_strided_slice %9 {offsets = [90, 0], sizes = [10, 128], strides = [1, 1]} : vector<100x128xf32> to vector<10x128xf32>
    %cst_27 = arith.constant dense<0.000000e+00> : vector<100x128xf32>
    %135 = tpu.matmul %10, %134, %cst_27 {dimension_numbers = #tpu.dot_dimension_numbers<[1], [0], [0], [1], [0, 0, 1, 1], [], []>} : vector<100x10xf32>, vector<10x128xf32>, vector<100x128xf32> -> vector<100x128xf32>
    %136 = arith.mulf %135, %23 : vector<100x128xf32>
    %cst_28 = arith.constant dense<0.000000e+00> : vector<100xf32>
    %137 = vector.multi_reduction <add>, %136, %cst_28 [1] : vector<100x128xf32> to vector<100xf32>
    %138 = vector.shape_cast %137 : vector<100xf32> to vector<100x1xf32>
    %c9_i32 = arith.constant 9 : i32
    %139 = vector.broadcast %c9_i32 : i32 to vector<100x10xi32>
    %140 = arith.cmpi eq, %24, %139 : vector<100x10xi32>
    %141 = arith.extui %140 : vector<100x10xi1> to vector<100x10xi32>
    %142 = arith.sitofp %141 : vector<100x10xi32> to vector<100x10xf32>
    %143 = vector.broadcast %138 : vector<100x1xf32> to vector<100x10xf32>
    %144 = arith.mulf %143, %142 : vector<100x10xf32>
    %145 = arith.addf %133, %144 : vector<100x10xf32>
    %cst_29 = arith.constant 0.000000e+00 : f32
    %146 = vector.broadcast %cst_29 : f32 to vector<100x10xf32>
    %147 = arith.cmpf ogt, %145, %146 : vector<100x10xf32>
    %cst_30 = arith.constant 2.000000e-01 : f32
    %148 = vector.broadcast %cst_30 : f32 to vector<100x10xf32>
    %149 = arith.mulf %148, %145 : vector<100x10xf32>
    %150 = arith.select %147, %145, %149 : vector<100x10xi1>, vector<100x10xf32>
    %151 = vector.extract_strided_slice %150 {offsets = [0, 0], sizes = [10, 10], strides = [1, 1]} : vector<100x10xf32> to vector<10x10xf32>
    %cst_31 = arith.constant dense<0xFF800000> : vector<10xf32>
    %152 = vector.multi_reduction <maximumf>, %151, %cst_31 [0] : vector<10x10xf32> to vector<10xf32>
    %153 = vector.shape_cast %152 : vector<10xf32> to vector<1x10xf32>
    %154 = vector.broadcast %153 : vector<1x10xf32> to vector<10x10xf32>
    %155 = arith.subf %151, %154 : vector<10x10xf32>
    %156 = math.exp %155 : vector<10x10xf32>
    %cst_32 = arith.constant dense<0.000000e+00> : vector<10xf32>
    %157 = vector.multi_reduction <add>, %156, %cst_32 [0] : vector<10x10xf32> to vector<10xf32>
    %158 = vector.shape_cast %157 : vector<10xf32> to vector<1x10xf32>
    %159 = tpu.reciprocal %158 {approx = true} : vector<1x10xf32> -> vector<1x10xf32>
    %160 = vector.broadcast %159 : vector<1x10xf32> to vector<10x10xf32>
    %161 = arith.mulf %156, %160 : vector<10x10xf32>
    %162 = vector.extract_strided_slice %9 {offsets = [0, 0], sizes = [10, 128], strides = [1, 1]} : vector<100x128xf32> to vector<10x128xf32>
    %cst_33 = arith.constant dense<0.000000e+00> : vector<10x128xf32>
    %163 = tpu.matmul %161, %162, %cst_33 {dimension_numbers = #tpu.dot_dimension_numbers<[1], [0], [0], [1], [0, 0, 1, 1], [], []>} : vector<10x10xf32>, vector<10x128xf32>, vector<10x128xf32> -> vector<10x128xf32>
    %cst_34 = arith.constant 0.000000e+00 : f32
    %164 = vector.broadcast %cst_34 : f32 to vector<10x128xf32>
    %165 = arith.cmpf ogt, %163, %164 : vector<10x128xf32>
    %cst_35 = arith.constant 0.000000e+00 : f32
    %166 = vector.broadcast %cst_35 : f32 to vector<10x128xf32>
    %167 = arith.minimumf %163, %166 : vector<10x128xf32>
    %168 = math.exp %167 : vector<10x128xf32>
    %cst_36 = arith.constant 1.000000e+00 : f32
    %169 = vector.broadcast %cst_36 : f32 to vector<10x128xf32>
    %170 = arith.subf %168, %169 : vector<10x128xf32>
    %171 = arith.select %165, %163, %170 : vector<10x128xi1>, vector<10x128xf32>
    %c0_37 = arith.constant 0 : index
    %c0_38 = arith.constant 0 : index
    %172 = vector.load %arg3[%c0_37, %c0_38] : memref<100x128xf32, #tpu.memory_space<vmem>>, vector<10x128xf32>
    tpu.vector_store %arg3[%c0_37, %c0_38], %171 {strides = array<i32>} : memref<100x128xf32, #tpu.memory_space<vmem>>, vector<10x128xf32>,
    %173 = vector.extract_strided_slice %150 {offsets = [10, 0], sizes = [10, 10], strides = [1, 1]} : vector<100x10xf32> to vector<10x10xf32>
    %cst_39 = arith.constant dense<0xFF800000> : vector<10xf32>
    %174 = vector.multi_reduction <maximumf>, %173, %cst_39 [0] : vector<10x10xf32> to vector<10xf32>
    %175 = vector.shape_cast %174 : vector<10xf32> to vector<1x10xf32>
    %176 = vector.broadcast %175 : vector<1x10xf32> to vector<10x10xf32>
    %177 = arith.subf %173, %176 : vector<10x10xf32>
    %178 = math.exp %177 : vector<10x10xf32>
    %cst_40 = arith.constant dense<0.000000e+00> : vector<10xf32>
    %179 = vector.multi_reduction <add>, %178, %cst_40 [0] : vector<10x10xf32> to vector<10xf32>
    %180 = vector.shape_cast %179 : vector<10xf32> to vector<1x10xf32>
    %181 = tpu.reciprocal %180 {approx = true} : vector<1x10xf32> -> vector<1x10xf32>
    %182 = vector.broadcast %181 : vector<1x10xf32> to vector<10x10xf32>
    %183 = arith.mulf %178, %182 : vector<10x10xf32>
    %184 = vector.extract_strided_slice %9 {offsets = [10, 0], sizes = [10, 128], strides = [1, 1]} : vector<100x128xf32> to vector<10x128xf32>
    %cst_41 = arith.constant dense<0.000000e+00> : vector<10x128xf32>
    %185 = tpu.matmul %183, %184, %cst_41 {dimension_numbers = #tpu.dot_dimension_numbers<[1], [0], [0], [1], [0, 0, 1, 1], [], []>} : vector<10x10xf32>, vector<10x128xf32>, vector<10x128xf32> -> vector<10x128xf32>
    %cst_42 = arith.constant 0.000000e+00 : f32
    %186 = vector.broadcast %cst_42 : f32 to vector<10x128xf32>
    %187 = arith.cmpf ogt, %185, %186 : vector<10x128xf32>
    %cst_43 = arith.constant 0.000000e+00 : f32
    %188 = vector.broadcast %cst_43 : f32 to vector<10x128xf32>
    %189 = arith.minimumf %185, %188 : vector<10x128xf32>
    %190 = math.exp %189 : vector<10x128xf32>
    %cst_44 = arith.constant 1.000000e+00 : f32
    %191 = vector.broadcast %cst_44 : f32 to vector<10x128xf32>
    %192 = arith.subf %190, %191 : vector<10x128xf32>
    %193 = arith.select %187, %185, %192 : vector<10x128xi1>, vector<10x128xf32>
    %c10 = arith.constant 10 : index
    %c0_45 = arith.constant 0 : index
    %194 = vector.load %arg3[%c10, %c0_45] : memref<100x128xf32, #tpu.memory_space<vmem>>, vector<10x128xf32>
    tpu.vector_store %arg3[%c10, %c0_45], %193 {strides = array<i32>} : memref<100x128xf32, #tpu.memory_space<vmem>>, vector<10x128xf32>,
    %195 = vector.extract_strided_slice %150 {offsets = [20, 0], sizes = [10, 10], strides = [1, 1]} : vector<100x10xf32> to vector<10x10xf32>
    %cst_46 = arith.constant dense<0xFF800000> : vector<10xf32>
    %196 = vector.multi_reduction <maximumf>, %195, %cst_46 [0] : vector<10x10xf32> to vector<10xf32>
    %197 = vector.shape_cast %196 : vector<10xf32> to vector<1x10xf32>
    %198 = vector.broadcast %197 : vector<1x10xf32> to vector<10x10xf32>
    %199 = arith.subf %195, %198 : vector<10x10xf32>
    %200 = math.exp %199 : vector<10x10xf32>
    %cst_47 = arith.constant dense<0.000000e+00> : vector<10xf32>
    %201 = vector.multi_reduction <add>, %200, %cst_47 [0] : vector<10x10xf32> to vector<10xf32>
    %202 = vector.shape_cast %201 : vector<10xf32> to vector<1x10xf32>
    %203 = tpu.reciprocal %202 {approx = true} : vector<1x10xf32> -> vector<1x10xf32>
    %204 = vector.broadcast %203 : vector<1x10xf32> to vector<10x10xf32>
    %205 = arith.mulf %200, %204 : vector<10x10xf32>
    %206 = vector.extract_strided_slice %9 {offsets = [20, 0], sizes = [10, 128], strides = [1, 1]} : vector<100x128xf32> to vector<10x128xf32>
    %cst_48 = arith.constant dense<0.000000e+00> : vector<10x128xf32>
    %207 = tpu.matmul %205, %206, %cst_48 {dimension_numbers = #tpu.dot_dimension_numbers<[1], [0], [0], [1], [0, 0, 1, 1], [], []>} : vector<10x10xf32>, vector<10x128xf32>, vector<10x128xf32> -> vector<10x128xf32>
    %cst_49 = arith.constant 0.000000e+00 : f32
    %208 = vector.broadcast %cst_49 : f32 to vector<10x128xf32>
    %209 = arith.cmpf ogt, %207, %208 : vector<10x128xf32>
    %cst_50 = arith.constant 0.000000e+00 : f32
    %210 = vector.broadcast %cst_50 : f32 to vector<10x128xf32>
    %211 = arith.minimumf %207, %210 : vector<10x128xf32>
    %212 = math.exp %211 : vector<10x128xf32>
    %cst_51 = arith.constant 1.000000e+00 : f32
    %213 = vector.broadcast %cst_51 : f32 to vector<10x128xf32>
    %214 = arith.subf %212, %213 : vector<10x128xf32>
    %215 = arith.select %209, %207, %214 : vector<10x128xi1>, vector<10x128xf32>
    %c20 = arith.constant 20 : index
    %c0_52 = arith.constant 0 : index
    %216 = vector.load %arg3[%c20, %c0_52] : memref<100x128xf32, #tpu.memory_space<vmem>>, vector<10x128xf32>
    tpu.vector_store %arg3[%c20, %c0_52], %215 {strides = array<i32>} : memref<100x128xf32, #tpu.memory_space<vmem>>, vector<10x128xf32>,
    %217 = vector.extract_strided_slice %150 {offsets = [30, 0], sizes = [10, 10], strides = [1, 1]} : vector<100x10xf32> to vector<10x10xf32>
    %cst_53 = arith.constant dense<0xFF800000> : vector<10xf32>
    %218 = vector.multi_reduction <maximumf>, %217, %cst_53 [0] : vector<10x10xf32> to vector<10xf32>
    %219 = vector.shape_cast %218 : vector<10xf32> to vector<1x10xf32>
    %220 = vector.broadcast %219 : vector<1x10xf32> to vector<10x10xf32>
    %221 = arith.subf %217, %220 : vector<10x10xf32>
    %222 = math.exp %221 : vector<10x10xf32>
    %cst_54 = arith.constant dense<0.000000e+00> : vector<10xf32>
    %223 = vector.multi_reduction <add>, %222, %cst_54 [0] : vector<10x10xf32> to vector<10xf32>
    %224 = vector.shape_cast %223 : vector<10xf32> to vector<1x10xf32>
    %225 = tpu.reciprocal %224 {approx = true} : vector<1x10xf32> -> vector<1x10xf32>
    %226 = vector.broadcast %225 : vector<1x10xf32> to vector<10x10xf32>
    %227 = arith.mulf %222, %226 : vector<10x10xf32>
    %228 = vector.extract_strided_slice %9 {offsets = [30, 0], sizes = [10, 128], strides = [1, 1]} : vector<100x128xf32> to vector<10x128xf32>
    %cst_55 = arith.constant dense<0.000000e+00> : vector<10x128xf32>
    %229 = tpu.matmul %227, %228, %cst_55 {dimension_numbers = #tpu.dot_dimension_numbers<[1], [0], [0], [1], [0, 0, 1, 1], [], []>} : vector<10x10xf32>, vector<10x128xf32>, vector<10x128xf32> -> vector<10x128xf32>
    %cst_56 = arith.constant 0.000000e+00 : f32
    %230 = vector.broadcast %cst_56 : f32 to vector<10x128xf32>
    %231 = arith.cmpf ogt, %229, %230 : vector<10x128xf32>
    %cst_57 = arith.constant 0.000000e+00 : f32
    %232 = vector.broadcast %cst_57 : f32 to vector<10x128xf32>
    %233 = arith.minimumf %229, %232 : vector<10x128xf32>
    %234 = math.exp %233 : vector<10x128xf32>
    %cst_58 = arith.constant 1.000000e+00 : f32
    %235 = vector.broadcast %cst_58 : f32 to vector<10x128xf32>
    %236 = arith.subf %234, %235 : vector<10x128xf32>
    %237 = arith.select %231, %229, %236 : vector<10x128xi1>, vector<10x128xf32>
    %c30 = arith.constant 30 : index
    %c0_59 = arith.constant 0 : index
    %238 = vector.load %arg3[%c30, %c0_59] : memref<100x128xf32, #tpu.memory_space<vmem>>, vector<10x128xf32>
    tpu.vector_store %arg3[%c30, %c0_59], %237 {strides = array<i32>} : memref<100x128xf32, #tpu.memory_space<vmem>>, vector<10x128xf32>,
    %239 = vector.extract_strided_slice %150 {offsets = [40, 0], sizes = [10, 10], strides = [1, 1]} : vector<100x10xf32> to vector<10x10xf32>
    %cst_60 = arith.constant dense<0xFF800000> : vector<10xf32>
    %240 = vector.multi_reduction <maximumf>, %239, %cst_60 [0] : vector<10x10xf32> to vector<10xf32>
    %241 = vector.shape_cast %240 : vector<10xf32> to vector<1x10xf32>
    %242 = vector.broadcast %241 : vector<1x10xf32> to vector<10x10xf32>
    %243 = arith.subf %239, %242 : vector<10x10xf32>
    %244 = math.exp %243 : vector<10x10xf32>
    %cst_61 = arith.constant dense<0.000000e+00> : vector<10xf32>
    %245 = vector.multi_reduction <add>, %244, %cst_61 [0] : vector<10x10xf32> to vector<10xf32>
    %246 = vector.shape_cast %245 : vector<10xf32> to vector<1x10xf32>
    %247 = tpu.reciprocal %246 {approx = true} : vector<1x10xf32> -> vector<1x10xf32>
    %248 = vector.broadcast %247 : vector<1x10xf32> to vector<10x10xf32>
    %249 = arith.mulf %244, %248 : vector<10x10xf32>
    %250 = vector.extract_strided_slice %9 {offsets = [40, 0], sizes = [10, 128], strides = [1, 1]} : vector<100x128xf32> to vector<10x128xf32>
    %cst_62 = arith.constant dense<0.000000e+00> : vector<10x128xf32>
    %251 = tpu.matmul %249, %250, %cst_62 {dimension_numbers = #tpu.dot_dimension_numbers<[1], [0], [0], [1], [0, 0, 1, 1], [], []>} : vector<10x10xf32>, vector<10x128xf32>, vector<10x128xf32> -> vector<10x128xf32>
    %cst_63 = arith.constant 0.000000e+00 : f32
    %252 = vector.broadcast %cst_63 : f32 to vector<10x128xf32>
    %253 = arith.cmpf ogt, %251, %252 : vector<10x128xf32>
    %cst_64 = arith.constant 0.000000e+00 : f32
    %254 = vector.broadcast %cst_64 : f32 to vector<10x128xf32>
    %255 = arith.minimumf %251, %254 : vector<10x128xf32>
    %256 = math.exp %255 : vector<10x128xf32>
    %cst_65 = arith.constant 1.000000e+00 : f32
    %257 = vector.broadcast %cst_65 : f32 to vector<10x128xf32>
    %258 = arith.subf %256, %257 : vector<10x128xf32>
    %259 = arith.select %253, %251, %258 : vector<10x128xi1>, vector<10x128xf32>
    %c40 = arith.constant 40 : index
    %c0_66 = arith.constant 0 : index
    %260 = vector.load %arg3[%c40, %c0_66] : memref<100x128xf32, #tpu.memory_space<vmem>>, vector<10x128xf32>
    tpu.vector_store %arg3[%c40, %c0_66], %259 {strides = array<i32>} : memref<100x128xf32, #tpu.memory_space<vmem>>, vector<10x128xf32>,
    %261 = vector.extract_strided_slice %150 {offsets = [50, 0], sizes = [10, 10], strides = [1, 1]} : vector<100x10xf32> to vector<10x10xf32>
    %cst_67 = arith.constant dense<0xFF800000> : vector<10xf32>
    %262 = vector.multi_reduction <maximumf>, %261, %cst_67 [0] : vector<10x10xf32> to vector<10xf32>
    %263 = vector.shape_cast %262 : vector<10xf32> to vector<1x10xf32>
    %264 = vector.broadcast %263 : vector<1x10xf32> to vector<10x10xf32>
    %265 = arith.subf %261, %264 : vector<10x10xf32>
    %266 = math.exp %265 : vector<10x10xf32>
    %cst_68 = arith.constant dense<0.000000e+00> : vector<10xf32>
    %267 = vector.multi_reduction <add>, %266, %cst_68 [0] : vector<10x10xf32> to vector<10xf32>
    %268 = vector.shape_cast %267 : vector<10xf32> to vector<1x10xf32>
    %269 = tpu.reciprocal %268 {approx = true} : vector<1x10xf32> -> vector<1x10xf32>
    %270 = vector.broadcast %269 : vector<1x10xf32> to vector<10x10xf32>
    %271 = arith.mulf %266, %270 : vector<10x10xf32>
    %272 = vector.extract_strided_slice %9 {offsets = [50, 0], sizes = [10, 128], strides = [1, 1]} : vector<100x128xf32> to vector<10x128xf32>
    %cst_69 = arith.constant dense<0.000000e+00> : vector<10x128xf32>
    %273 = tpu.matmul %271, %272, %cst_69 {dimension_numbers = #tpu.dot_dimension_numbers<[1], [0], [0], [1], [0, 0, 1, 1], [], []>} : vector<10x10xf32>, vector<10x128xf32>, vector<10x128xf32> -> vector<10x128xf32>
    %cst_70 = arith.constant 0.000000e+00 : f32
    %274 = vector.broadcast %cst_70 : f32 to vector<10x128xf32>
    %275 = arith.cmpf ogt, %273, %274 : vector<10x128xf32>
    %cst_71 = arith.constant 0.000000e+00 : f32
    %276 = vector.broadcast %cst_71 : f32 to vector<10x128xf32>
    %277 = arith.minimumf %273, %276 : vector<10x128xf32>
    %278 = math.exp %277 : vector<10x128xf32>
    %cst_72 = arith.constant 1.000000e+00 : f32
    %279 = vector.broadcast %cst_72 : f32 to vector<10x128xf32>
    %280 = arith.subf %278, %279 : vector<10x128xf32>
    %281 = arith.select %275, %273, %280 : vector<10x128xi1>, vector<10x128xf32>
    %c50 = arith.constant 50 : index
    %c0_73 = arith.constant 0 : index
    %282 = vector.load %arg3[%c50, %c0_73] : memref<100x128xf32, #tpu.memory_space<vmem>>, vector<10x128xf32>
    tpu.vector_store %arg3[%c50, %c0_73], %281 {strides = array<i32>} : memref<100x128xf32, #tpu.memory_space<vmem>>, vector<10x128xf32>,
    %283 = vector.extract_strided_slice %150 {offsets = [60, 0], sizes = [10, 10], strides = [1, 1]} : vector<100x10xf32> to vector<10x10xf32>
    %cst_74 = arith.constant dense<0xFF800000> : vector<10xf32>
    %284 = vector.multi_reduction <maximumf>, %283, %cst_74 [0] : vector<10x10xf32> to vector<10xf32>
    %285 = vector.shape_cast %284 : vector<10xf32> to vector<1x10xf32>
    %286 = vector.broadcast %285 : vector<1x10xf32> to vector<10x10xf32>
    %287 = arith.subf %283, %286 : vector<10x10xf32>
    %288 = math.exp %287 : vector<10x10xf32>
    %cst_75 = arith.constant dense<0.000000e+00> : vector<10xf32>
    %289 = vector.multi_reduction <add>, %288, %cst_75 [0] : vector<10x10xf32> to vector<10xf32>
    %290 = vector.shape_cast %289 : vector<10xf32> to vector<1x10xf32>
    %291 = tpu.reciprocal %290 {approx = true} : vector<1x10xf32> -> vector<1x10xf32>
    %292 = vector.broadcast %291 : vector<1x10xf32> to vector<10x10xf32>
    %293 = arith.mulf %288, %292 : vector<10x10xf32>
    %294 = vector.extract_strided_slice %9 {offsets = [60, 0], sizes = [10, 128], strides = [1, 1]} : vector<100x128xf32> to vector<10x128xf32>
    %cst_76 = arith.constant dense<0.000000e+00> : vector<10x128xf32>
    %295 = tpu.matmul %293, %294, %cst_76 {dimension_numbers = #tpu.dot_dimension_numbers<[1], [0], [0], [1], [0, 0, 1, 1], [], []>} : vector<10x10xf32>, vector<10x128xf32>, vector<10x128xf32> -> vector<10x128xf32>
    %cst_77 = arith.constant 0.000000e+00 : f32
    %296 = vector.broadcast %cst_77 : f32 to vector<10x128xf32>
    %297 = arith.cmpf ogt, %295, %296 : vector<10x128xf32>
    %cst_78 = arith.constant 0.000000e+00 : f32
    %298 = vector.broadcast %cst_78 : f32 to vector<10x128xf32>
    %299 = arith.minimumf %295, %298 : vector<10x128xf32>
    %300 = math.exp %299 : vector<10x128xf32>
    %cst_79 = arith.constant 1.000000e+00 : f32
    %301 = vector.broadcast %cst_79 : f32 to vector<10x128xf32>
    %302 = arith.subf %300, %301 : vector<10x128xf32>
    %303 = arith.select %297, %295, %302 : vector<10x128xi1>, vector<10x128xf32>
    %c60 = arith.constant 60 : index
    %c0_80 = arith.constant 0 : index
    %304 = vector.load %arg3[%c60, %c0_80] : memref<100x128xf32, #tpu.memory_space<vmem>>, vector<10x128xf32>
    tpu.vector_store %arg3[%c60, %c0_80], %303 {strides = array<i32>} : memref<100x128xf32, #tpu.memory_space<vmem>>, vector<10x128xf32>,
    %305 = vector.extract_strided_slice %150 {offsets = [70, 0], sizes = [10, 10], strides = [1, 1]} : vector<100x10xf32> to vector<10x10xf32>
    %cst_81 = arith.constant dense<0xFF800000> : vector<10xf32>
    %306 = vector.multi_reduction <maximumf>, %305, %cst_81 [0] : vector<10x10xf32> to vector<10xf32>
    %307 = vector.shape_cast %306 : vector<10xf32> to vector<1x10xf32>
    %308 = vector.broadcast %307 : vector<1x10xf32> to vector<10x10xf32>
    %309 = arith.subf %305, %308 : vector<10x10xf32>
    %310 = math.exp %309 : vector<10x10xf32>
    %cst_82 = arith.constant dense<0.000000e+00> : vector<10xf32>
    %311 = vector.multi_reduction <add>, %310, %cst_82 [0] : vector<10x10xf32> to vector<10xf32>
    %312 = vector.shape_cast %311 : vector<10xf32> to vector<1x10xf32>
    %313 = tpu.reciprocal %312 {approx = true} : vector<1x10xf32> -> vector<1x10xf32>
    %314 = vector.broadcast %313 : vector<1x10xf32> to vector<10x10xf32>
    %315 = arith.mulf %310, %314 : vector<10x10xf32>
    %316 = vector.extract_strided_slice %9 {offsets = [70, 0], sizes = [10, 128], strides = [1, 1]} : vector<100x128xf32> to vector<10x128xf32>
    %cst_83 = arith.constant dense<0.000000e+00> : vector<10x128xf32>
    %317 = tpu.matmul %315, %316, %cst_83 {dimension_numbers = #tpu.dot_dimension_numbers<[1], [0], [0], [1], [0, 0, 1, 1], [], []>} : vector<10x10xf32>, vector<10x128xf32>, vector<10x128xf32> -> vector<10x128xf32>
    %cst_84 = arith.constant 0.000000e+00 : f32
    %318 = vector.broadcast %cst_84 : f32 to vector<10x128xf32>
    %319 = arith.cmpf ogt, %317, %318 : vector<10x128xf32>
    %cst_85 = arith.constant 0.000000e+00 : f32
    %320 = vector.broadcast %cst_85 : f32 to vector<10x128xf32>
    %321 = arith.minimumf %317, %320 : vector<10x128xf32>
    %322 = math.exp %321 : vector<10x128xf32>
    %cst_86 = arith.constant 1.000000e+00 : f32
    %323 = vector.broadcast %cst_86 : f32 to vector<10x128xf32>
    %324 = arith.subf %322, %323 : vector<10x128xf32>
    %325 = arith.select %319, %317, %324 : vector<10x128xi1>, vector<10x128xf32>
    %c70 = arith.constant 70 : index
    %c0_87 = arith.constant 0 : index
    %326 = vector.load %arg3[%c70, %c0_87] : memref<100x128xf32, #tpu.memory_space<vmem>>, vector<10x128xf32>
    tpu.vector_store %arg3[%c70, %c0_87], %325 {strides = array<i32>} : memref<100x128xf32, #tpu.memory_space<vmem>>, vector<10x128xf32>,
    %327 = vector.extract_strided_slice %150 {offsets = [80, 0], sizes = [10, 10], strides = [1, 1]} : vector<100x10xf32> to vector<10x10xf32>
    %cst_88 = arith.constant dense<0xFF800000> : vector<10xf32>
    %328 = vector.multi_reduction <maximumf>, %327, %cst_88 [0] : vector<10x10xf32> to vector<10xf32>
    %329 = vector.shape_cast %328 : vector<10xf32> to vector<1x10xf32>
    %330 = vector.broadcast %329 : vector<1x10xf32> to vector<10x10xf32>
    %331 = arith.subf %327, %330 : vector<10x10xf32>
    %332 = math.exp %331 : vector<10x10xf32>
    %cst_89 = arith.constant dense<0.000000e+00> : vector<10xf32>
    %333 = vector.multi_reduction <add>, %332, %cst_89 [0] : vector<10x10xf32> to vector<10xf32>
    %334 = vector.shape_cast %333 : vector<10xf32> to vector<1x10xf32>
    %335 = tpu.reciprocal %334 {approx = true} : vector<1x10xf32> -> vector<1x10xf32>
    %336 = vector.broadcast %335 : vector<1x10xf32> to vector<10x10xf32>
    %337 = arith.mulf %332, %336 : vector<10x10xf32>
    %338 = vector.extract_strided_slice %9 {offsets = [80, 0], sizes = [10, 128], strides = [1, 1]} : vector<100x128xf32> to vector<10x128xf32>
    %cst_90 = arith.constant dense<0.000000e+00> : vector<10x128xf32>
    %339 = tpu.matmul %337, %338, %cst_90 {dimension_numbers = #tpu.dot_dimension_numbers<[1], [0], [0], [1], [0, 0, 1, 1], [], []>} : vector<10x10xf32>, vector<10x128xf32>, vector<10x128xf32> -> vector<10x128xf32>
    %cst_91 = arith.constant 0.000000e+00 : f32
    %340 = vector.broadcast %cst_91 : f32 to vector<10x128xf32>
    %341 = arith.cmpf ogt, %339, %340 : vector<10x128xf32>
    %cst_92 = arith.constant 0.000000e+00 : f32
    %342 = vector.broadcast %cst_92 : f32 to vector<10x128xf32>
    %343 = arith.minimumf %339, %342 : vector<10x128xf32>
    %344 = math.exp %343 : vector<10x128xf32>
    %cst_93 = arith.constant 1.000000e+00 : f32
    %345 = vector.broadcast %cst_93 : f32 to vector<10x128xf32>
    %346 = arith.subf %344, %345 : vector<10x128xf32>
    %347 = arith.select %341, %339, %346 : vector<10x128xi1>, vector<10x128xf32>
    %c80 = arith.constant 80 : index
    %c0_94 = arith.constant 0 : index
    %348 = vector.load %arg3[%c80, %c0_94] : memref<100x128xf32, #tpu.memory_space<vmem>>, vector<10x128xf32>
    tpu.vector_store %arg3[%c80, %c0_94], %347 {strides = array<i32>} : memref<100x128xf32, #tpu.memory_space<vmem>>, vector<10x128xf32>,
    %349 = vector.extract_strided_slice %150 {offsets = [90, 0], sizes = [10, 10], strides = [1, 1]} : vector<100x10xf32> to vector<10x10xf32>
    %cst_95 = arith.constant dense<0xFF800000> : vector<10xf32>
    %350 = vector.multi_reduction <maximumf>, %349, %cst_95 [0] : vector<10x10xf32> to vector<10xf32>
    %351 = vector.shape_cast %350 : vector<10xf32> to vector<1x10xf32>
    %352 = vector.broadcast %351 : vector<1x10xf32> to vector<10x10xf32>
    %353 = arith.subf %349, %352 : vector<10x10xf32>
    %354 = math.exp %353 : vector<10x10xf32>
    %cst_96 = arith.constant dense<0.000000e+00> : vector<10xf32>
    %355 = vector.multi_reduction <add>, %354, %cst_96 [0] : vector<10x10xf32> to vector<10xf32>
    %356 = vector.shape_cast %355 : vector<10xf32> to vector<1x10xf32>
    %357 = tpu.reciprocal %356 {approx = true} : vector<1x10xf32> -> vector<1x10xf32>
    %358 = vector.broadcast %357 : vector<1x10xf32> to vector<10x10xf32>
    %359 = arith.mulf %354, %358 : vector<10x10xf32>
    %360 = vector.extract_strided_slice %9 {offsets = [90, 0], sizes = [10, 128], strides = [1, 1]} : vector<100x128xf32> to vector<10x128xf32>
    %cst_97 = arith.constant dense<0.000000e+00> : vector<10x128xf32>
    %361 = tpu.matmul %359, %360, %cst_97 {dimension_numbers = #tpu.dot_dimension_numbers<[1], [0], [0], [1], [0, 0, 1, 1], [], []>} : vector<10x10xf32>, vector<10x128xf32>, vector<10x128xf32> -> vector<10x128xf32>
    %cst_98 = arith.constant 0.000000e+00 : f32
    %362 = vector.broadcast %cst_98 : f32 to vector<10x128xf32>
    %363 = arith.cmpf ogt, %361, %362 : vector<10x128xf32>
    %cst_99 = arith.constant 0.000000e+00 : f32
    %364 = vector.broadcast %cst_99 : f32 to vector<10x128xf32>
    %365 = arith.minimumf %361, %364 : vector<10x128xf32>
    %366 = math.exp %365 : vector<10x128xf32>
    %cst_100 = arith.constant 1.000000e+00 : f32
    %367 = vector.broadcast %cst_100 : f32 to vector<10x128xf32>
    %368 = arith.subf %366, %367 : vector<10x128xf32>
    %369 = arith.select %363, %361, %368 : vector<10x128xi1>, vector<10x128xf32>
    %c90 = arith.constant 90 : index
    %c0_101 = arith.constant 0 : index
    %370 = vector.load %arg3[%c90, %c0_101] : memref<100x128xf32, #tpu.memory_space<vmem>>, vector<10x128xf32>
    tpu.vector_store %arg3[%c90, %c0_101], %369 {strides = array<i32>} : memref<100x128xf32, #tpu.memory_space<vmem>>, vector<10x128xf32>,
    return
  }
}

</mosaic_0001>

<llo_original>
// kernel: tpu_custom_call.1
$region0: #{tpu_custom_call.1}
  #allocation0 [shape = 'u32[]', space=smem, size = 0x4, offset = 0x4, fixed_abs, tag = 'smem constant byte address 0x4 - core index']
  #allocation1 [shape = 'u32[72,128]{1,0:T(1,128)}', space=vmem, size = 0x9000, scoped, tag = 'internal scratch']
  %s0 = inlined_call_operand.vmem [shape: s32[100,1], index: 0, kind: input, shape index: {}]
  %s1 = inlined_call_operand.vmem [shape: f32[10,128], index: 1, kind: input, shape index: {}]
  %s2 = inlined_call_operand.hbm [shape: f32[128,128], index: 2, kind: input, shape index: {}]
  %s3 = inlined_call_operand.hbm [shape: f32[100,128], index: 3, kind: output, shape index: {}]
  %s4 = sld [smem:[#allocation0]]
  $region26: #{tpu_custom_call.1} parent=0
    _
  %s6 = ssub.s32 1, %s4
  %s7 = scalar_select 0, %s6, %s4
  $region1: #{tpu_custom_call.1} parent=0
    #allocation2 [shape = 'u8[65536]{0}', space=vmem, size = 0x10000, scoped, tag = 'input window, operand 2, single buffered']
    #allocation3 [shape = 's32[1]{0}', space=sflag, size = 0x4, scoped, tag = 'scoped memory for tpu_custom_call.1']
    #allocation4 [shape = 's32[1]{0}', space=sflag, size = 0x4, scoped, tag = 'scoped memory for tpu_custom_call.1']
    #allocation5 [shape = 'u8[53248]{0}', space=vmem, size = 0xd000, scoped, tag = 'output window, operand 0, single buffered']
    %8 = vsyncpa [#allocation3], 0
    %9 = vsyncpa [#allocation4], 0
    // Predicated region
    $region2: #{tpu_custom_call.1} parent=1 // pred_check
      _
    $region3: #{tpu_custom_call.1} parent=1 // pred_check_branch
      %11 = sbr.rel (0) target = $region5
    $region4: #{tpu_custom_call.1} parent=1 // pred_region
      _
    $region5: #{tpu_custom_call.1} parent=1 // pred_fallthru
      _
    // Predicated region
    $region6: #{tpu_custom_call.1} parent=1 // pred_check
      _
    $region7: #{tpu_custom_call.1} parent=1 // pred_check_branch
      %13 = sbr.rel (0) target = $region9
    $region8: #{tpu_custom_call.1} parent=1 // pred_region
      _
    $region9: #{tpu_custom_call.1} parent=1 // pred_fallthru
      _
    // Predicated region
    $region10: #{tpu_custom_call.1} parent=1 // pred_check
      _
    $region11: #{tpu_custom_call.1} parent=1 // pred_check_branch
      %15 = sbr.rel (0) target = $region13
    $region12: #{tpu_custom_call.1} parent=1 // pred_region
      %17 = vsyncadd [#allocation3], 0
      %s18 = sshll.u32 %s2, 4
      %s19 = int_to_ptr.hbm [resolvable:$true] %s18
      %s20 = sshll.u32 [#allocation2], 4
      %s21 = int_to_ptr.vmem [resolvable:$true] %s20
      %26 = dma.hbm_to_vmem [thread:$0]  %s19, 2048, %s21, [#allocation3], 128, 128, 8
    $region13: #{tpu_custom_call.1} parent=1 // pred_fallthru
      _
    // Predicated region
    $region14: #{tpu_custom_call.1} parent=1 // pred_check
      _
    $region15: #{tpu_custom_call.1} parent=1 // pred_check_branch
      %28 = sbr.rel (0) target = $region17
    $region16: #{tpu_custom_call.1} parent=1 // pred_region
      %30 = dma.done [#allocation3], 2048
    $region17: #{tpu_custom_call.1} parent=1 // pred_fallthru
      _
    %v31 = vld [vmem:[%s1] sm:$0xff]
    %v32 = vld [vmem:[%s1 + $0x8] sm:$0x3]
    %v33 = vld [vmem:[#allocation2] sm:$0xff]
    %v34 = vld [vmem:[#allocation2 + $0x8] sm:$0xff]
    %v35 = vld [vmem:[#allocation2 + $0x10] sm:$0xff]
    %v36 = vld [vmem:[#allocation2 + $0x18] sm:$0xff]
    %v37 = vld [vmem:[#allocation2 + $0x20] sm:$0xff]
    %v38 = vld [vmem:[#allocation2 + $0x28] sm:$0xff]
    %v39 = vld [vmem:[#allocation2 + $0x30] sm:$0xff]
    %v40 = vld [vmem:[#allocation2 + $0x38] sm:$0xff]
    %v41 = vld [vmem:[#allocation2 + $0x40] sm:$0xff]
    %v42 = vld [vmem:[#allocation2 + $0x48] sm:$0xff]
    %v43 = vld [vmem:[#allocation2 + $0x50] sm:$0xff]
    %v44 = vld [vmem:[#allocation2 + $0x58] sm:$0xff]
    %v45 = vld [vmem:[#allocation2 + $0x60] sm:$0xff]
    %v46 = vld [vmem:[#allocation2 + $0x68] sm:$0xff]
    %v47 = vld [vmem:[#allocation2 + $0x70] sm:$0xff]
    %v48 = vld [vmem:[#allocation2 + $0x78] sm:$0xff]
    %49 = vmatpush.msra.mxu0 %v48
    %50 = vmatpush.msra.mxu0 %v47
    %51 = vmatpush.msra.mxu0 %v46
    %52 = vmatpush.msra.mxu0 %v45
    %53 = vmatpush.msra.mxu0 %v44
    %54 = vmatpush.msra.mxu0 %v43
    %55 = vmatpush.msra.mxu0 %v42
    %56 = vmatpush.msra.mxu0 %v41
    %57 = vmatpush.msra.mxu0 %v40
    %58 = vmatpush.msra.mxu0 %v39
    %59 = vmatpush.msra.mxu0 %v38
    %60 = vmatpush.msra.mxu0 %v37
    %61 = vmatpush.msra.mxu0 %v36
    %62 = vmatpush.msra.mxu0 %v35
    %63 = vmatpush.msra.mxu0 %v34
    %64 = vmatpush.msra.mxu0 %v33
    %65 = vmatmul.f32.gmra.mxu0 %v31
    %v66 = vpop.f32.mrf.mxu0
    %v67 = vadd.f32 0.0, %v66
    %68 = vmatmul.f32.gmra.mxu0 %v32
    %v69 = vpop.f32.mrf.mxu0
    %v70 = vadd.f32 0.0, %v69
    %71 = vdwg.mxu0
    %v72 = vlaneseq
    %v73 = vand.u32 %v72, 127
    %v74 = vld [vmem:[%s0] sm:$0xff]
    %v75 = vld [vmem:[%s0 + $0x8] sm:$0xff]
    %v76 = vld [vmem:[%s0 + $0x10] sm:$0xff]
    %v77 = vld [vmem:[%s0 + $0x18] sm:$0xff]
    %v78 = vld [vmem:[%s0 + $0x20] sm:$0xff]
    %v79 = vld [vmem:[%s0 + $0x28] sm:$0xff]
    %v80 = vld [vmem:[%s0 + $0x30] sm:$0xff]
    %v81 = vld [vmem:[%s0 + $0x38] sm:$0xff]
    %v82 = vld [vmem:[%s0 + $0x40] sm:$0xff]
    %v83 = vld [vmem:[%s0 + $0x48] sm:$0xff]
    %v84 = vld [vmem:[%s0 + $0x50] sm:$0xff]
    %v85 = vld [vmem:[%s0 + $0x58] sm:$0xff]
    %v86 = vld [vmem:[%s0 + $0x60] sm:$0xf]
    %87 = vset.pattern.permute.xlu0 0
    %88 = vperm.xlu0 %87, %v74
    %v89 = vpop.permute.xlu0 %88
    %90 = vset.pattern.permute.xlu0 0
    %91 = vperm.xlu0 %90, %v75
    %v92 = vpop.permute.xlu0 %91
    %93 = vset.pattern.permute.xlu0 0
    %94 = vperm.xlu0 %93, %v76
    %v95 = vpop.permute.xlu0 %94
    %96 = vset.pattern.permute.xlu0 0
    %97 = vperm.xlu0 %96, %v77
    %v98 = vpop.permute.xlu0 %97
    %99 = vset.pattern.permute.xlu0 0
    %100 = vperm.xlu0 %99, %v78
    %v101 = vpop.permute.xlu0 %100
    %102 = vset.pattern.permute.xlu0 0
    %103 = vperm.xlu0 %102, %v79
    %v104 = vpop.permute.xlu0 %103
    %105 = vset.pattern.permute.xlu0 0
    %106 = vperm.xlu0 %105, %v80
    %v107 = vpop.permute.xlu0 %106
    %108 = vset.pattern.permute.xlu0 0
    %109 = vperm.xlu0 %108, %v81
    %v110 = vpop.permute.xlu0 %109
    %111 = vset.pattern.permute.xlu0 0
    %112 = vperm.xlu0 %111, %v82
    %v113 = vpop.permute.xlu0 %112
    %114 = vset.pattern.permute.xlu0 0
    %115 = vperm.xlu0 %114, %v83
    %v116 = vpop.permute.xlu0 %115
    %117 = vset.pattern.permute.xlu0 0
    %118 = vperm.xlu0 %117, %v84
    %v119 = vpop.permute.xlu0 %118
    %120 = vset.pattern.permute.xlu0 0
    %121 = vperm.xlu0 %120, %v85
    %v122 = vpop.permute.xlu0 %121
    %123 = vset.pattern.permute.xlu0 0
    %124 = vperm.xlu0 %123, %v86
    %v125 = vpop.permute.xlu0 %124
    %vm126 = vcmp.eq.s32.totalorder %v89, %v73
    %vm127 = vcmp.eq.s32.totalorder %v92, %v73
    %vm128 = vcmp.eq.s32.totalorder %v95, %v73
    %vm129 = vcmp.eq.s32.totalorder %v98, %v73
    %vm130 = vcmp.eq.s32.totalorder %v101, %v73
    %vm131 = vcmp.eq.s32.totalorder %v104, %v73
    %vm132 = vcmp.eq.s32.totalorder %v107, %v73
    %vm133 = vcmp.eq.s32.totalorder %v110, %v73
    %vm134 = vcmp.eq.s32.totalorder %v113, %v73
    %vm135 = vcmp.eq.s32.totalorder %v116, %v73
    %vm136 = vcmp.eq.s32.totalorder %v119, %v73
    %vm137 = vcmp.eq.s32.totalorder %v122, %v73
    %vm138 = vcmp.eq.s32.totalorder %v125, %v73
    %v139 = vsel %vm126, 1, 0
    %v140 = vsel %vm127, 1, 0
    %v141 = vsel %vm128, 1, 0
    %v142 = vsel %vm129, 1, 0
    %v143 = vsel %vm130, 1, 0
    %v144 = vsel %vm131, 1, 0
    %v145 = vsel %vm132, 1, 0
    %v146 = vsel %vm133, 1, 0
    %v147 = vsel %vm134, 1, 0
    %v148 = vsel %vm135, 1, 0
    %v149 = vsel %vm136, 1, 0
    %v150 = vsel %vm137, 1, 0
    %v151 = vsel %vm138, 1, 0
    %v152 = vcvt.s32.f32 %v139
    %v153 = vcvt.s32.f32 %v140
    %v154 = vcvt.s32.f32 %v141
    %v155 = vcvt.s32.f32 %v142
    %v156 = vcvt.s32.f32 %v143
    %v157 = vcvt.s32.f32 %v144
    %v158 = vcvt.s32.f32 %v145
    %v159 = vcvt.s32.f32 %v146
    %v160 = vcvt.s32.f32 %v147
    %v161 = vcvt.s32.f32 %v148
    %v162 = vcvt.s32.f32 %v149
    %v163 = vcvt.s32.f32 %v150
    %v164 = vcvt.s32.f32 %v151
    %vm165 = vcmask 80896
    %v167 = vsel %vm165, %v152, 0
    %v170 = vsel %vm165, %v153, 0
    %v173 = vsel %vm165, %v154, 0
    %v176 = vsel %vm165, %v155, 0
    %v179 = vsel %vm165, %v156, 0
    %v182 = vsel %vm165, %v157, 0
    %v185 = vsel %vm165, %v158, 0
    %v188 = vsel %vm165, %v159, 0
    %v191 = vsel %vm165, %v160, 0
    %v194 = vsel %vm165, %v161, 0
    %v197 = vsel %vm165, %v162, 0
    %v200 = vsel %vm165, %v163, 0
    %v203 = vsel %vm165, %v164, 0
    %vm205 = vcmask 1041408
    %v207 = vsel %vm205, %v70, 0
    %209 = vmatpush.msra.mxu0 0.0
    %210 = vmatpush.msra.mxu0 0.0
    %211 = vmatpush.msra.mxu0 0.0
    %212 = vmatpush.msra.mxu0 0.0
    %213 = vmatpush.msra.mxu0 0.0
    %214 = vmatpush.msra.mxu0 0.0
    %215 = vmatpush.msra.mxu0 0.0
    %216 = vmatpush.msra.mxu0 0.0
    %217 = vmatpush.msra.mxu0 0.0
    %218 = vmatpush.msra.mxu0 0.0
    %219 = vmatpush.msra.mxu0 0.0
    %220 = vmatpush.msra.mxu0 0.0
    %221 = vmatpush.msra.mxu0 0.0
    %222 = vmatpush.msra.mxu0 0.0
    %223 = vmatpush.msra.mxu0 %v207
    %224 = vmatpush.msra.mxu0 %v67
    %225 = vmatmul.f32.gmra.mxu0 %v167
    %v226 = vpop.f32.mrf.mxu0
    %v227 = vadd.f32 0.0, %v226
    %228 = vmatmul.f32.gmra.mxu0 %v170
    %v229 = vpop.f32.mrf.mxu0
    %v230 = vadd.f32 0.0, %v229
    %231 = vmatmul.f32.gmra.mxu0 %v173
    %v232 = vpop.f32.mrf.mxu0
    %v233 = vadd.f32 0.0, %v232
    %234 = vmatmul.f32.gmra.mxu0 %v176
    %v235 = vpop.f32.mrf.mxu0
    %v236 = vadd.f32 0.0, %v235
    %237 = vmatmul.f32.gmra.mxu0 %v179
    %v238 = vpop.f32.mrf.mxu0
    %v239 = vadd.f32 0.0, %v238
    %240 = vmatmul.f32.gmra.mxu0 %v182
    %v241 = vpop.f32.mrf.mxu0
    %v242 = vadd.f32 0.0, %v241
    %243 = vmatmul.f32.gmra.mxu0 %v185
    %v244 = vpop.f32.mrf.mxu0
    %v245 = vadd.f32 0.0, %v244
    %246 = vmatmul.f32.gmra.mxu0 %v188
    %v247 = vpop.f32.mrf.mxu0
    %v248 = vadd.f32 0.0, %v247
    %249 = vmatmul.f32.gmra.mxu0 %v191
    %v250 = vpop.f32.mrf.mxu0
    %v251 = vadd.f32 0.0, %v250
    %252 = vmatmul.f32.gmra.mxu0 %v194
    %v253 = vpop.f32.mrf.mxu0
    %v254 = vadd.f32 0.0, %v253
    %255 = vmatmul.f32.gmra.mxu0 %v197
    %v256 = vpop.f32.mrf.mxu0
    %v257 = vadd.f32 0.0, %v256
    %258 = vmatmul.f32.gmra.mxu0 %v200
    %v259 = vpop.f32.mrf.mxu0
    %v260 = vadd.f32 0.0, %v259
    %261 = vmatmul.f32.gmra.mxu0 %v203
    %v262 = vpop.f32.mrf.mxu0
    %v263 = vadd.f32 0.0, %v262
    %264 = vdwg.mxu0
    %v265 = vlaneseq
    %v266 = vshrl.u32 %v265, 7
    %v267 = vadd.s32 %v266, 8
    %v268 = vadd.s32 %v266, 16
    %v269 = vadd.s32 %v266, 24
    %v270 = vadd.s32 %v266, 32
    %v271 = vadd.s32 %v266, 40
    %v272 = vadd.s32 %v266, 48
    %v273 = vadd.s32 %v266, 56
    %v274 = vadd.s32 %v266, 64
    %v275 = vadd.s32 %v266, 72
    %v276 = vadd.s32 %v266, 80
    %v277 = vadd.s32 %v266, 88
    %v278 = vadd.s32 %v266, 96
    %v279 = vmul.u32 %v73, 10
    %vm280 = vcmp.le.s32.totalorder %v279, %v266
    %vm281 = vcmp.le.s32.totalorder %v279, %v267
    %vm282 = vcmp.le.s32.totalorder %v279, %v268
    %vm283 = vcmp.le.s32.totalorder %v279, %v269
    %vm284 = vcmp.le.s32.totalorder %v279, %v270
    %vm285 = vcmp.le.s32.totalorder %v279, %v271
    %vm286 = vcmp.le.s32.totalorder %v279, %v272
    %vm287 = vcmp.le.s32.totalorder %v279, %v273
    %vm288 = vcmp.le.s32.totalorder %v279, %v274
    %vm289 = vcmp.le.s32.totalorder %v279, %v275
    %vm290 = vcmp.le.s32.totalorder %v279, %v276
    %vm291 = vcmp.le.s32.totalorder %v279, %v277
    %vm292 = vcmp.le.s32.totalorder %v279, %v278
    %v293 = vadd.s32 %v73, 1
    %v294 = vmul.u32 %v293, 10
    %vm295 = vcmp.lt.s32.totalorder %v266, %v294
    %vm296 = vcmp.lt.s32.totalorder %v267, %v294
    %vm297 = vcmp.lt.s32.totalorder %v268, %v294
    %vm298 = vcmp.lt.s32.totalorder %v269, %v294
    %vm299 = vcmp.lt.s32.totalorder %v270, %v294
    %vm300 = vcmp.lt.s32.totalorder %v271, %v294
    %vm301 = vcmp.lt.s32.totalorder %v272, %v294
    %vm302 = vcmp.lt.s32.totalorder %v273, %v294
    %vm303 = vcmp.lt.s32.totalorder %v274, %v294
    %vm304 = vcmp.lt.s32.totalorder %v275, %v294
    %vm305 = vcmp.lt.s32.totalorder %v276, %v294
    %vm306 = vcmp.lt.s32.totalorder %v277, %v294
    %vm307 = vcmp.lt.s32.totalorder %v278, %v294
    %vm308 = vmand %vm280, %vm295
    %vm309 = vmand %vm281, %vm296
    %vm310 = vmand %vm282, %vm297
    %vm311 = vmand %vm283, %vm298
    %vm312 = vmand %vm284, %vm299
    %vm313 = vmand %vm285, %vm300
    %vm314 = vmand %vm286, %vm301
    %vm315 = vmand %vm287, %vm302
    %vm316 = vmand %vm288, %vm303
    %vm317 = vmand %vm289, %vm304
    %vm318 = vmand %vm290, %vm305
    %vm319 = vmand %vm291, %vm306
    %vm320 = vmand %vm292, %vm307
    %v321 = vsel %vm308, 1, 0
    %v322 = vsel %vm309, 1, 0
    %v323 = vsel %vm310, 1, 0
    %v324 = vsel %vm311, 1, 0
    %v325 = vsel %vm312, 1, 0
    %v326 = vsel %vm313, 1, 0
    %v327 = vsel %vm314, 1, 0
    %v328 = vsel %vm315, 1, 0
    %v329 = vsel %vm316, 1, 0
    %v330 = vsel %vm317, 1, 0
    %v331 = vsel %vm318, 1, 0
    %v332 = vsel %vm319, 1, 0
    %v333 = vsel %vm320, 1, 0
    %v334 = vcvt.s32.f32 %v321
    %v335 = vcvt.s32.f32 %v322
    %v336 = vcvt.s32.f32 %v323
    %v337 = vcvt.s32.f32 %v324
    %v338 = vcvt.s32.f32 %v325
    %v339 = vcvt.s32.f32 %v326
    %v340 = vcvt.s32.f32 %v327
    %v341 = vcvt.s32.f32 %v328
    %v342 = vcvt.s32.f32 %v329
    %v343 = vcvt.s32.f32 %v330
    %v344 = vcvt.s32.f32 %v331
    %v345 = vcvt.s32.f32 %v332
    %v346 = vcvt.s32.f32 %v333
    %v348 = vsel %vm165, %v227, 0
    %v351 = vsel %vm165, %v230, 0
    %v354 = vsel %vm165, %v233, 0
    %v357 = vsel %vm165, %v236, 0
    %v360 = vsel %vm165, %v239, 0
    %v363 = vsel %vm165, %v242, 0
    %v366 = vsel %vm165, %v245, 0
    %v369 = vsel %vm165, %v248, 0
    %v372 = vsel %vm165, %v251, 0
    %v375 = vsel %vm165, %v254, 0
    %v378 = vsel %vm165, %v257, 0
    %v381 = vsel %vm165, %v260, 0
    %v384 = vsel %vm165, %v263, 0
    %v386 = vsel %vm205, %v230, 0
    %388 = vmatpush.msra.mxu0 0.0
    %389 = vmatpush.msra.mxu0 0.0
    %390 = vmatpush.msra.mxu0 0.0
    %391 = vmatpush.msra.mxu0 0.0
    %392 = vmatpush.msra.mxu0 0.0
    %393 = vmatpush.msra.mxu0 0.0
    %394 = vmatpush.msra.mxu0 0.0
    %395 = vmatpush.msra.mxu0 0.0
    %396 = vmatpush.msra.mxu0 0.0
    %397 = vmatpush.msra.mxu0 0.0
    %398 = vmatpush.msra.mxu0 0.0
    %399 = vmatpush.msra.mxu0 0.0
    %400 = vmatpush.msra.mxu0 0.0
    %401 = vmatpush.msra.mxu0 0.0
    %402 = vmatpush.msra.mxu0 %v386
    %403 = vmatpush.msra.mxu0 %v227
    %404 = vmatmul.f32.gmra.mxu0 %v348
    %v405 = vpop.f32.mrf.mxu0
    %v406 = vadd.f32 0.0, %v405
    %407 = vmatmul.f32.gmra.mxu0 %v351
    %v408 = vpop.f32.mrf.mxu0
    %v409 = vadd.f32 0.0, %v408
    %410 = vmatmul.f32.gmra.mxu0 %v354
    %v411 = vpop.f32.mrf.mxu0
    %v412 = vadd.f32 0.0, %v411
    %413 = vmatmul.f32.gmra.mxu0 %v357
    %v414 = vpop.f32.mrf.mxu0
    %v415 = vadd.f32 0.0, %v414
    %416 = vmatmul.f32.gmra.mxu0 %v360
    %v417 = vpop.f32.mrf.mxu0
    %v418 = vadd.f32 0.0, %v417
    %419 = vmatmul.f32.gmra.mxu0 %v363
    %v420 = vpop.f32.mrf.mxu0
    %v421 = vadd.f32 0.0, %v420
    %422 = vmatmul.f32.gmra.mxu0 %v366
    %v423 = vpop.f32.mrf.mxu0
    %v424 = vadd.f32 0.0, %v423
    %425 = vmatmul.f32.gmra.mxu0 %v369
    %v426 = vpop.f32.mrf.mxu0
    %v427 = vadd.f32 0.0, %v426
    %428 = vmatmul.f32.gmra.mxu0 %v372
    %v429 = vpop.f32.mrf.mxu0
    %v430 = vadd.f32 0.0, %v429
    %431 = vmatmul.f32.gmra.mxu0 %v375
    %v432 = vpop.f32.mrf.mxu0
    %v433 = vadd.f32 0.0, %v432
    %434 = vmatmul.f32.gmra.mxu0 %v378
    %v435 = vpop.f32.mrf.mxu0
    %v436 = vadd.f32 0.0, %v435
    %437 = vmatmul.f32.gmra.mxu0 %v381
    %v438 = vpop.f32.mrf.mxu0
    %v439 = vadd.f32 0.0, %v438
    %440 = vmatmul.f32.gmra.mxu0 %v384
    %v441 = vpop.f32.mrf.mxu0
    %v442 = vadd.f32 0.0, %v441
    %443 = vdwg.mxu0
    %v444 = vmul.f32 %v406, %v334
    %v445 = vmul.f32 %v409, %v335
    %v446 = vmul.f32 %v412, %v336
    %v447 = vmul.f32 %v415, %v337
    %v448 = vmul.f32 %v418, %v338
    %v449 = vmul.f32 %v421, %v339
    %v450 = vmul.f32 %v424, %v340
    %v451 = vmul.f32 %v427, %v341
    %v452 = vmul.f32 %v430, %v342
    %v453 = vmul.f32 %v433, %v343
    %v454 = vmul.f32 %v436, %v344
    %v455 = vmul.f32 %v439, %v345
    %v456 = vmul.f32 %v442, %v346
    %457 = vadd.xlane.f32.xlu0 %v444
    %v458 = vpop.xlane.xlu0 %457
    %459 = vadd.xlane.f32.xlu0 %v445
    %v460 = vpop.xlane.xlu0 %459
    %461 = vadd.xlane.f32.xlu0 %v446
    %v462 = vpop.xlane.xlu0 %461
    %463 = vadd.xlane.f32.xlu0 %v447
    %v464 = vpop.xlane.xlu0 %463
    %465 = vadd.xlane.f32.xlu0 %v448
    %v466 = vpop.xlane.xlu0 %465
    %467 = vadd.xlane.f32.xlu0 %v449
    %v468 = vpop.xlane.xlu0 %467
    %469 = vadd.xlane.f32.xlu0 %v450
    %v470 = vpop.xlane.xlu0 %469
    %471 = vadd.xlane.f32.xlu0 %v451
    %v472 = vpop.xlane.xlu0 %471
    %473 = vadd.xlane.f32.xlu0 %v452
    %v474 = vpop.xlane.xlu0 %473
    %475 = vadd.xlane.f32.xlu0 %v453
    %v476 = vpop.xlane.xlu0 %475
    %477 = vadd.xlane.f32.xlu0 %v454
    %v478 = vpop.xlane.xlu0 %477
    %479 = vadd.xlane.f32.xlu0 %v455
    %v480 = vpop.xlane.xlu0 %479
    %vm481 = vcmask 1043456
    %v482 = vsel %vm481, %v456, 0.0
    %483 = vadd.xlane.f32.xlu0 %v482
    %v484 = vpop.xlane.xlu0 %483
    %vm485 = vcmp.eq.s32.totalorder %v73, 0
    %v486 = vsel %vm485, 1, 0
    %v487 = vcvt.s32.f32 %v486
    %v488 = vmul.f32 %v458, %v487
    %v489 = vmul.f32 %v460, %v487
    %v490 = vmul.f32 %v462, %v487
    %v491 = vmul.f32 %v464, %v487
    %v492 = vmul.f32 %v466, %v487
    %v493 = vmul.f32 %v468, %v487
    %v494 = vmul.f32 %v470, %v487
    %v495 = vmul.f32 %v472, %v487
    %v496 = vmul.f32 %v474, %v487
    %v497 = vmul.f32 %v476, %v487
    %v498 = vmul.f32 %v478, %v487
    %v499 = vmul.f32 %v480, %v487
    %v500 = vmul.f32 %v484, %v487
    %v501 = vadd.f32 %v488, 0.0
    %v502 = vadd.f32 %v489, 0.0
    %v503 = vadd.f32 %v490, 0.0
    %v504 = vadd.f32 %v491, 0.0
    %v505 = vadd.f32 %v492, 0.0
    %v506 = vadd.f32 %v493, 0.0
    %v507 = vadd.f32 %v494, 0.0
    %v508 = vadd.f32 %v495, 0.0
    %v509 = vadd.f32 %v496, 0.0
    %v510 = vadd.f32 %v497, 0.0
    %v511 = vadd.f32 %v498, 0.0
    %v512 = vadd.f32 %v499, 0.0
    %v513 = vadd.f32 %v500, 0.0
    %vm514 = vcmask 1045504
    %v515 = vrot.slane %v230, 2
    %v516 = vrot.slane %v233, 2
    %v517 = vsel %vm514, %v515, %v516
    %v519 = vsel %vm205, %v516, 0
    %521 = vmatpush.msra.mxu0 0.0
    %522 = vmatpush.msra.mxu0 0.0
    %523 = vmatpush.msra.mxu0 0.0
    %524 = vmatpush.msra.mxu0 0.0
    %525 = vmatpush.msra.mxu0 0.0
    %526 = vmatpush.msra.mxu0 0.0
    %527 = vmatpush.msra.mxu0 0.0
    %528 = vmatpush.msra.mxu0 0.0
    %529 = vmatpush.msra.mxu0 0.0
    %530 = vmatpush.msra.mxu0 0.0
    %531 = vmatpush.msra.mxu0 0.0
    %532 = vmatpush.msra.mxu0 0.0
    %533 = vmatpush.msra.mxu0 0.0
    %534 = vmatpush.msra.mxu0 0.0
    %535 = vmatpush.msra.mxu0 %v519
    %536 = vmatpush.msra.mxu0 %v517
    %537 = vmatmul.f32.gmra.mxu0 %v348
    %v538 = vpop.f32.mrf.mxu0
    %v539 = vadd.f32 0.0, %v538
    %540 = vmatmul.f32.gmra.mxu0 %v351
    %v541 = vpop.f32.mrf.mxu0
    %v542 = vadd.f32 0.0, %v541
    %543 = vmatmul.f32.gmra.mxu0 %v354
    %v544 = vpop.f32.mrf.mxu0
    %v545 = vadd.f32 0.0, %v544
    %546 = vmatmul.f32.gmra.mxu0 %v357
    %v547 = vpop.f32.mrf.mxu0
    %v548 = vadd.f32 0.0, %v547
    %549 = vmatmul.f32.gmra.mxu0 %v360
    %v550 = vpop.f32.mrf.mxu0
    %v551 = vadd.f32 0.0, %v550
    %552 = vmatmul.f32.gmra.mxu0 %v363
    %v553 = vpop.f32.mrf.mxu0
    %v554 = vadd.f32 0.0, %v553
    %555 = vmatmul.f32.gmra.mxu0 %v366
    %v556 = vpop.f32.mrf.mxu0
    %v557 = vadd.f32 0.0, %v556
    %558 = vmatmul.f32.gmra.mxu0 %v369
    %v559 = vpop.f32.mrf.mxu0
    %v560 = vadd.f32 0.0, %v559
    %561 = vmatmul.f32.gmra.mxu0 %v372
    %v562 = vpop.f32.mrf.mxu0
    %v563 = vadd.f32 0.0, %v562
    %564 = vmatmul.f32.gmra.mxu0 %v375
    %v565 = vpop.f32.mrf.mxu0
    %v566 = vadd.f32 0.0, %v565
    %567 = vmatmul.f32.gmra.mxu0 %v378
    %v568 = vpop.f32.mrf.mxu0
    %v569 = vadd.f32 0.0, %v568
    %570 = vmatmul.f32.gmra.mxu0 %v381
    %v571 = vpop.f32.mrf.mxu0
    %v572 = vadd.f32 0.0, %v571
    %573 = vmatmul.f32.gmra.mxu0 %v384
    %v574 = vpop.f32.mrf.mxu0
    %v575 = vadd.f32 0.0, %v574
    %576 = vdwg.mxu0
    %v577 = vmul.f32 %v539, %v334
    %v578 = vmul.f32 %v542, %v335
    %v579 = vmul.f32 %v545, %v336
    %v580 = vmul.f32 %v548, %v337
    %v581 = vmul.f32 %v551, %v338
    %v582 = vmul.f32 %v554, %v339
    %v583 = vmul.f32 %v557, %v340
    %v584 = vmul.f32 %v560, %v341
    %v585 = vmul.f32 %v563, %v342
    %v586 = vmul.f32 %v566, %v343
    %v587 = vmul.f32 %v569, %v344
    %v588 = vmul.f32 %v572, %v345
    %v589 = vmul.f32 %v575, %v346
    %590 = vadd.xlane.f32.xlu0 %v577
    %v591 = vpop.xlane.xlu0 %590
    %592 = vadd.xlane.f32.xlu0 %v578
    %v593 = vpop.xlane.xlu0 %592
    %594 = vadd.xlane.f32.xlu0 %v579
    %v595 = vpop.xlane.xlu0 %594
    %596 = vadd.xlane.f32.xlu0 %v580
    %v597 = vpop.xlane.xlu0 %596
    %598 = vadd.xlane.f32.xlu0 %v581
    %v599 = vpop.xlane.xlu0 %598
    %600 = vadd.xlane.f32.xlu0 %v582
    %v601 = vpop.xlane.xlu0 %600
    %602 = vadd.xlane.f32.xlu0 %v583
    %v603 = vpop.xlane.xlu0 %602
    %604 = vadd.xlane.f32.xlu0 %v584
    %v605 = vpop.xlane.xlu0 %604
    %606 = vadd.xlane.f32.xlu0 %v585
    %v607 = vpop.xlane.xlu0 %606
    %608 = vadd.xlane.f32.xlu0 %v586
    %v609 = vpop.xlane.xlu0 %608
    %610 = vadd.xlane.f32.xlu0 %v587
    %v611 = vpop.xlane.xlu0 %610
    %612 = vadd.xlane.f32.xlu0 %v588
    %v613 = vpop.xlane.xlu0 %612
    %v614 = vsel %vm481, %v589, 0.0
    %615 = vadd.xlane.f32.xlu0 %v614
    %v616 = vpop.xlane.xlu0 %615
    %vm617 = vcmp.eq.s32.totalorder %v73, 1
    %v618 = vsel %vm617, 1, 0
    %v619 = vcvt.s32.f32 %v618
    %v620 = vmul.f32 %v591, %v619
    %v621 = vmul.f32 %v593, %v619
    %v622 = vmul.f32 %v595, %v619
    %v623 = vmul.f32 %v597, %v619
    %v624 = vmul.f32 %v599, %v619
    %v625 = vmul.f32 %v601, %v619
    %v626 = vmul.f32 %v603, %v619
    %v627 = vmul.f32 %v605, %v619
    %v628 = vmul.f32 %v607, %v619
    %v629 = vmul.f32 %v609, %v619
    %v630 = vmul.f32 %v611, %v619
    %v631 = vmul.f32 %v613, %v619
    %v632 = vmul.f32 %v616, %v619
    %v633 = vadd.f32 %v501, %v620
    %v634 = vadd.f32 %v502, %v621
    %v635 = vadd.f32 %v503, %v622
    %v636 = vadd.f32 %v504, %v623
    %v637 = vadd.f32 %v505, %v624
    %v638 = vadd.f32 %v506, %v625
    %v639 = vadd.f32 %v507, %v626
    %v640 = vadd.f32 %v508, %v627
    %v641 = vadd.f32 %v509, %v628
    %v642 = vadd.f32 %v510, %v629
    %v643 = vadd.f32 %v511, %v630
    %v644 = vadd.f32 %v512, %v631
    %v645 = vadd.f32 %v513, %v632
    %v646 = vrot.slane %v233, 4
    %v647 = vrot.slane %v236, 4
    %v648 = vsel %vm481, %v646, %v647
    %v650 = vsel %vm205, %v647, 0
    %652 = vmatpush.msra.mxu0 0.0
    %653 = vmatpush.msra.mxu0 0.0
    %654 = vmatpush.msra.mxu0 0.0
    %655 = vmatpush.msra.mxu0 0.0
    %656 = vmatpush.msra.mxu0 0.0
    %657 = vmatpush.msra.mxu0 0.0
    %658 = vmatpush.msra.mxu0 0.0
    %659 = vmatpush.msra.mxu0 0.0
    %660 = vmatpush.msra.mxu0 0.0
    %661 = vmatpush.msra.mxu0 0.0
    %662 = vmatpush.msra.mxu0 0.0
    %663 = vmatpush.msra.mxu0 0.0
    %664 = vmatpush.msra.mxu0 0.0
    %665 = vmatpush.msra.mxu0 0.0
    %666 = vmatpush.msra.mxu0 %v650
    %667 = vmatpush.msra.mxu0 %v648
    %668 = vmatmul.f32.gmra.mxu0 %v348
    %v669 = vpop.f32.mrf.mxu0
    %v670 = vadd.f32 0.0, %v669
    %671 = vmatmul.f32.gmra.mxu0 %v351
    %v672 = vpop.f32.mrf.mxu0
    %v673 = vadd.f32 0.0, %v672
    %674 = vmatmul.f32.gmra.mxu0 %v354
    %v675 = vpop.f32.mrf.mxu0
    %v676 = vadd.f32 0.0, %v675
    %677 = vmatmul.f32.gmra.mxu0 %v357
    %v678 = vpop.f32.mrf.mxu0
    %v679 = vadd.f32 0.0, %v678
    %680 = vmatmul.f32.gmra.mxu0 %v360
    %v681 = vpop.f32.mrf.mxu0
    %v682 = vadd.f32 0.0, %v681
    %683 = vmatmul.f32.gmra.mxu0 %v363
    %v684 = vpop.f32.mrf.mxu0
    %v685 = vadd.f32 0.0, %v684
    %686 = vmatmul.f32.gmra.mxu0 %v366
    %v687 = vpop.f32.mrf.mxu0
    %v688 = vadd.f32 0.0, %v687
    %689 = vmatmul.f32.gmra.mxu0 %v369
    %v690 = vpop.f32.mrf.mxu0
    %v691 = vadd.f32 0.0, %v690
    %692 = vmatmul.f32.gmra.mxu0 %v372
    %v693 = vpop.f32.mrf.mxu0
    %v694 = vadd.f32 0.0, %v693
    %695 = vmatmul.f32.gmra.mxu0 %v375
    %v696 = vpop.f32.mrf.mxu0
    %v697 = vadd.f32 0.0, %v696
    %698 = vmatmul.f32.gmra.mxu0 %v378
    %v699 = vpop.f32.mrf.mxu0
    %v700 = vadd.f32 0.0, %v699
    %701 = vmatmul.f32.gmra.mxu0 %v381
    %v702 = vpop.f32.mrf.mxu0
    %v703 = vadd.f32 0.0, %v702
    %704 = vmatmul.f32.gmra.mxu0 %v384
    %v705 = vpop.f32.mrf.mxu0
    %v706 = vadd.f32 0.0, %v705
    %707 = vdwg.mxu0
    %v708 = vmul.f32 %v670, %v334
    %v709 = vmul.f32 %v673, %v335
    %v710 = vmul.f32 %v676, %v336
    %v711 = vmul.f32 %v679, %v337
    %v712 = vmul.f32 %v682, %v338
    %v713 = vmul.f32 %v685, %v339
    %v714 = vmul.f32 %v688, %v340
    %v715 = vmul.f32 %v691, %v341
    %v716 = vmul.f32 %v694, %v342
    %v717 = vmul.f32 %v697, %v343
    %v718 = vmul.f32 %v700, %v344
    %v719 = vmul.f32 %v703, %v345
    %v720 = vmul.f32 %v706, %v346
    %721 = vadd.xlane.f32.xlu0 %v708
    %v722 = vpop.xlane.xlu0 %721
    %723 = vadd.xlane.f32.xlu0 %v709
    %v724 = vpop.xlane.xlu0 %723
    %725 = vadd.xlane.f32.xlu0 %v710
    %v726 = vpop.xlane.xlu0 %725
    %727 = vadd.xlane.f32.xlu0 %v711
    %v728 = vpop.xlane.xlu0 %727
    %729 = vadd.xlane.f32.xlu0 %v712
    %v730 = vpop.xlane.xlu0 %729
    %731 = vadd.xlane.f32.xlu0 %v713
    %v732 = vpop.xlane.xlu0 %731
    %733 = vadd.xlane.f32.xlu0 %v714
    %v734 = vpop.xlane.xlu0 %733
    %735 = vadd.xlane.f32.xlu0 %v715
    %v736 = vpop.xlane.xlu0 %735
    %737 = vadd.xlane.f32.xlu0 %v716
    %v738 = vpop.xlane.xlu0 %737
    %739 = vadd.xlane.f32.xlu0 %v717
    %v740 = vpop.xlane.xlu0 %739
    %741 = vadd.xlane.f32.xlu0 %v718
    %v742 = vpop.xlane.xlu0 %741
    %743 = vadd.xlane.f32.xlu0 %v719
    %v744 = vpop.xlane.xlu0 %743
    %v745 = vsel %vm481, %v720, 0.0
    %746 = vadd.xlane.f32.xlu0 %v745
    %v747 = vpop.xlane.xlu0 %746
    %vm748 = vcmp.eq.s32.totalorder %v73, 2
    %v749 = vsel %vm748, 1, 0
    %v750 = vcvt.s32.f32 %v749
    %v751 = vmul.f32 %v722, %v750
    %v752 = vmul.f32 %v724, %v750
    %v753 = vmul.f32 %v726, %v750
    %v754 = vmul.f32 %v728, %v750
    %v755 = vmul.f32 %v730, %v750
    %v756 = vmul.f32 %v732, %v750
    %v757 = vmul.f32 %v734, %v750
    %v758 = vmul.f32 %v736, %v750
    %v759 = vmul.f32 %v738, %v750
    %v760 = vmul.f32 %v740, %v750
    %v761 = vmul.f32 %v742, %v750
    %v762 = vmul.f32 %v744, %v750
    %v763 = vmul.f32 %v747, %v750
    %v764 = vadd.f32 %v633, %v751
    %v765 = vadd.f32 %v634, %v752
    %v766 = vadd.f32 %v635, %v753
    %v767 = vadd.f32 %v636, %v754
    %v768 = vadd.f32 %v637, %v755
    %v769 = vadd.f32 %v638, %v756
    %v770 = vadd.f32 %v639, %v757
    %v771 = vadd.f32 %v640, %v758
    %v772 = vadd.f32 %v641, %v759
    %v773 = vadd.f32 %v642, %v760
    %v774 = vadd.f32 %v643, %v761
    %v775 = vadd.f32 %v644, %v762
    %v776 = vadd.f32 %v645, %v763
    %v777 = vrot.slane %v236, 6
    %v778 = vrot.slane %v239, 6
    %v779 = vsel %vm205, %v777, %v778
    %v781 = vsel %vm205, %v778, 0
    %783 = vmatpush.msra.mxu0 0.0
    %784 = vmatpush.msra.mxu0 0.0
    %785 = vmatpush.msra.mxu0 0.0
    %786 = vmatpush.msra.mxu0 0.0
    %787 = vmatpush.msra.mxu0 0.0
    %788 = vmatpush.msra.mxu0 0.0
    %789 = vmatpush.msra.mxu0 0.0
    %790 = vmatpush.msra.mxu0 0.0
    %791 = vmatpush.msra.mxu0 0.0
    %792 = vmatpush.msra.mxu0 0.0
    %793 = vmatpush.msra.mxu0 0.0
    %794 = vmatpush.msra.mxu0 0.0
    %795 = vmatpush.msra.mxu0 0.0
    %796 = vmatpush.msra.mxu0 0.0
    %797 = vmatpush.msra.mxu0 %v781
    %798 = vmatpush.msra.mxu0 %v779
    %799 = vmatmul.f32.gmra.mxu0 %v348
    %v800 = vpop.f32.mrf.mxu0
    %v801 = vadd.f32 0.0, %v800
    %802 = vmatmul.f32.gmra.mxu0 %v351
    %v803 = vpop.f32.mrf.mxu0
    %v804 = vadd.f32 0.0, %v803
    %805 = vmatmul.f32.gmra.mxu0 %v354
    %v806 = vpop.f32.mrf.mxu0
    %v807 = vadd.f32 0.0, %v806
    %808 = vmatmul.f32.gmra.mxu0 %v357
    %v809 = vpop.f32.mrf.mxu0
    %v810 = vadd.f32 0.0, %v809
    %811 = vmatmul.f32.gmra.mxu0 %v360
    %v812 = vpop.f32.mrf.mxu0
    %v813 = vadd.f32 0.0, %v812
    %814 = vmatmul.f32.gmra.mxu0 %v363
    %v815 = vpop.f32.mrf.mxu0
    %v816 = vadd.f32 0.0, %v815
    %817 = vmatmul.f32.gmra.mxu0 %v366
    %v818 = vpop.f32.mrf.mxu0
    %v819 = vadd.f32 0.0, %v818
    %820 = vmatmul.f32.gmra.mxu0 %v369
    %v821 = vpop.f32.mrf.mxu0
    %v822 = vadd.f32 0.0, %v821
    %823 = vmatmul.f32.gmra.mxu0 %v372
    %v824 = vpop.f32.mrf.mxu0
    %v825 = vadd.f32 0.0, %v824
    %826 = vmatmul.f32.gmra.mxu0 %v375
    %v827 = vpop.f32.mrf.mxu0
    %v828 = vadd.f32 0.0, %v827
    %829 = vmatmul.f32.gmra.mxu0 %v378
    %v830 = vpop.f32.mrf.mxu0
    %v831 = vadd.f32 0.0, %v830
    %832 = vmatmul.f32.gmra.mxu0 %v381
    %v833 = vpop.f32.mrf.mxu0
    %v834 = vadd.f32 0.0, %v833
    %835 = vmatmul.f32.gmra.mxu0 %v384
    %v836 = vpop.f32.mrf.mxu0
    %v837 = vadd.f32 0.0, %v836
    %838 = vdwg.mxu0
    %v839 = vmul.f32 %v801, %v334
    %v840 = vmul.f32 %v804, %v335
    %v841 = vmul.f32 %v807, %v336
    %v842 = vmul.f32 %v810, %v337
    %v843 = vmul.f32 %v813, %v338
    %v844 = vmul.f32 %v816, %v339
    %v845 = vmul.f32 %v819, %v340
    %v846 = vmul.f32 %v822, %v341
    %v847 = vmul.f32 %v825, %v342
    %v848 = vmul.f32 %v828, %v343
    %v849 = vmul.f32 %v831, %v344
    %v850 = vmul.f32 %v834, %v345
    %v851 = vmul.f32 %v837, %v346
    %852 = vadd.xlane.f32.xlu0 %v839
    %v853 = vpop.xlane.xlu0 %852
    %854 = vadd.xlane.f32.xlu0 %v840
    %v855 = vpop.xlane.xlu0 %854
    %856 = vadd.xlane.f32.xlu0 %v841
    %v857 = vpop.xlane.xlu0 %856
    %858 = vadd.xlane.f32.xlu0 %v842
    %v859 = vpop.xlane.xlu0 %858
    %860 = vadd.xlane.f32.xlu0 %v843
    %v861 = vpop.xlane.xlu0 %860
    %862 = vadd.xlane.f32.xlu0 %v844
    %v863 = vpop.xlane.xlu0 %862
    %864 = vadd.xlane.f32.xlu0 %v845
    %v865 = vpop.xlane.xlu0 %864
    %866 = vadd.xlane.f32.xlu0 %v846
    %v867 = vpop.xlane.xlu0 %866
    %868 = vadd.xlane.f32.xlu0 %v847
    %v869 = vpop.xlane.xlu0 %868
    %870 = vadd.xlane.f32.xlu0 %v848
    %v871 = vpop.xlane.xlu0 %870
    %872 = vadd.xlane.f32.xlu0 %v849
    %v873 = vpop.xlane.xlu0 %872
    %874 = vadd.xlane.f32.xlu0 %v850
    %v875 = vpop.xlane.xlu0 %874
    %v876 = vsel %vm481, %v851, 0.0
    %877 = vadd.xlane.f32.xlu0 %v876
    %v878 = vpop.xlane.xlu0 %877
    %vm879 = vcmp.eq.s32.totalorder %v73, 3
    %v880 = vsel %vm879, 1, 0
    %v881 = vcvt.s32.f32 %v880
    %v882 = vmul.f32 %v853, %v881
    %v883 = vmul.f32 %v855, %v881
    %v884 = vmul.f32 %v857, %v881
    %v885 = vmul.f32 %v859, %v881
    %v886 = vmul.f32 %v861, %v881
    %v887 = vmul.f32 %v863, %v881
    %v888 = vmul.f32 %v865, %v881
    %v889 = vmul.f32 %v867, %v881
    %v890 = vmul.f32 %v869, %v881
    %v891 = vmul.f32 %v871, %v881
    %v892 = vmul.f32 %v873, %v881
    %v893 = vmul.f32 %v875, %v881
    %v894 = vmul.f32 %v878, %v881
    %v895 = vadd.f32 %v764, %v882
    %v896 = vadd.f32 %v765, %v883
    %v897 = vadd.f32 %v766, %v884
    %v898 = vadd.f32 %v767, %v885
    %v899 = vadd.f32 %v768, %v886
    %v900 = vadd.f32 %v769, %v887
    %v901 = vadd.f32 %v770, %v888
    %v902 = vadd.f32 %v771, %v889
    %v903 = vadd.f32 %v772, %v890
    %v904 = vadd.f32 %v773, %v891
    %v905 = vadd.f32 %v774, %v892
    %v906 = vadd.f32 %v775, %v893
    %v907 = vadd.f32 %v776, %v894
    %v908 = vsel %vm205, %v245, 0
    %910 = vmatpush.msra.mxu0 0.0
    %911 = vmatpush.msra.mxu0 0.0
    %912 = vmatpush.msra.mxu0 0.0
    %913 = vmatpush.msra.mxu0 0.0
    %914 = vmatpush.msra.mxu0 0.0
    %915 = vmatpush.msra.mxu0 0.0
    %916 = vmatpush.msra.mxu0 0.0
    %917 = vmatpush.msra.mxu0 0.0
    %918 = vmatpush.msra.mxu0 0.0
    %919 = vmatpush.msra.mxu0 0.0
    %920 = vmatpush.msra.mxu0 0.0
    %921 = vmatpush.msra.mxu0 0.0
    %922 = vmatpush.msra.mxu0 0.0
    %923 = vmatpush.msra.mxu0 0.0
    %924 = vmatpush.msra.mxu0 %v908
    %925 = vmatpush.msra.mxu0 %v242
    %926 = vmatmul.f32.gmra.mxu0 %v348
    %v927 = vpop.f32.mrf.mxu0
    %v928 = vadd.f32 0.0, %v927
    %929 = vmatmul.f32.gmra.mxu0 %v351
    %v930 = vpop.f32.mrf.mxu0
    %v931 = vadd.f32 0.0, %v930
    %932 = vmatmul.f32.gmra.mxu0 %v354
    %v933 = vpop.f32.mrf.mxu0
    %v934 = vadd.f32 0.0, %v933
    %935 = vmatmul.f32.gmra.mxu0 %v357
    %v936 = vpop.f32.mrf.mxu0
    %v937 = vadd.f32 0.0, %v936
    %938 = vmatmul.f32.gmra.mxu0 %v360
    %v939 = vpop.f32.mrf.mxu0
    %v940 = vadd.f32 0.0, %v939
    %941 = vmatmul.f32.gmra.mxu0 %v363
    %v942 = vpop.f32.mrf.mxu0
    %v943 = vadd.f32 0.0, %v942
    %944 = vmatmul.f32.gmra.mxu0 %v366
    %v945 = vpop.f32.mrf.mxu0
    %v946 = vadd.f32 0.0, %v945
    %947 = vmatmul.f32.gmra.mxu0 %v369
    %v948 = vpop.f32.mrf.mxu0
    %v949 = vadd.f32 0.0, %v948
    %950 = vmatmul.f32.gmra.mxu0 %v372
    %v951 = vpop.f32.mrf.mxu0
    %v952 = vadd.f32 0.0, %v951
    %953 = vmatmul.f32.gmra.mxu0 %v375
    %v954 = vpop.f32.mrf.mxu0
    %v955 = vadd.f32 0.0, %v954
    %956 = vmatmul.f32.gmra.mxu0 %v378
    %v957 = vpop.f32.mrf.mxu0
    %v958 = vadd.f32 0.0, %v957
    %959 = vmatmul.f32.gmra.mxu0 %v381
    %v960 = vpop.f32.mrf.mxu0
    %v961 = vadd.f32 0.0, %v960
    %962 = vmatmul.f32.gmra.mxu0 %v384
    %v963 = vpop.f32.mrf.mxu0
    %v964 = vadd.f32 0.0, %v963
    %965 = vdwg.mxu0
    %v966 = vmul.f32 %v928, %v334
    %v967 = vmul.f32 %v931, %v335
    %v968 = vmul.f32 %v934, %v336
    %v969 = vmul.f32 %v937, %v337
    %v970 = vmul.f32 %v940, %v338
    %v971 = vmul.f32 %v943, %v339
    %v972 = vmul.f32 %v946, %v340
    %v973 = vmul.f32 %v949, %v341
    %v974 = vmul.f32 %v952, %v342
    %v975 = vmul.f32 %v955, %v343
    %v976 = vmul.f32 %v958, %v344
    %v977 = vmul.f32 %v961, %v345
    %v978 = vmul.f32 %v964, %v346
    %979 = vadd.xlane.f32.xlu0 %v966
    %v980 = vpop.xlane.xlu0 %979
    %981 = vadd.xlane.f32.xlu0 %v967
    %v982 = vpop.xlane.xlu0 %981
    %983 = vadd.xlane.f32.xlu0 %v968
    %v984 = vpop.xlane.xlu0 %983
    %985 = vadd.xlane.f32.xlu0 %v969
    %v986 = vpop.xlane.xlu0 %985
    %987 = vadd.xlane.f32.xlu0 %v970
    %v988 = vpop.xlane.xlu0 %987
    %989 = vadd.xlane.f32.xlu0 %v971
    %v990 = vpop.xlane.xlu0 %989
    %991 = vadd.xlane.f32.xlu0 %v972
    %v992 = vpop.xlane.xlu0 %991
    %993 = vadd.xlane.f32.xlu0 %v973
    %v994 = vpop.xlane.xlu0 %993
    %995 = vadd.xlane.f32.xlu0 %v974
    %v996 = vpop.xlane.xlu0 %995
    %997 = vadd.xlane.f32.xlu0 %v975
    %v998 = vpop.xlane.xlu0 %997
    %999 = vadd.xlane.f32.xlu0 %v976
    %v1000 = vpop.xlane.xlu0 %999
    %1001 = vadd.xlane.f32.xlu0 %v977
    %v1002 = vpop.xlane.xlu0 %1001
    %v1003 = vsel %vm481, %v978, 0.0
    %1004 = vadd.xlane.f32.xlu0 %v1003
    %v1005 = vpop.xlane.xlu0 %1004
    %vm1006 = vcmp.eq.s32.totalorder %v73, 4
    %v1007 = vsel %vm1006, 1, 0
    %v1008 = vcvt.s32.f32 %v1007
    %v1009 = vmul.f32 %v980, %v1008
    %v1010 = vmul.f32 %v982, %v1008
    %v1011 = vmul.f32 %v984, %v1008
    %v1012 = vmul.f32 %v986, %v1008
    %v1013 = vmul.f32 %v988, %v1008
    %v1014 = vmul.f32 %v990, %v1008
    %v1015 = vmul.f32 %v992, %v1008
    %v1016 = vmul.f32 %v994, %v1008
    %v1017 = vmul.f32 %v996, %v1008
    %v1018 = vmul.f32 %v998, %v1008
    %v1019 = vmul.f32 %v1000, %v1008
    %v1020 = vmul.f32 %v1002, %v1008
    %v1021 = vmul.f32 %v1005, %v1008
    %v1022 = vadd.f32 %v895, %v1009
    %v1023 = vadd.f32 %v896, %v1010
    %v1024 = vadd.f32 %v897, %v1011
    %v1025 = vadd.f32 %v898, %v1012
    %v1026 = vadd.f32 %v899, %v1013
    %v1027 = vadd.f32 %v900, %v1014
    %v1028 = vadd.f32 %v901, %v1015
    %v1029 = vadd.f32 %v902, %v1016
    %v1030 = vadd.f32 %v903, %v1017
    %v1031 = vadd.f32 %v904, %v1018
    %v1032 = vadd.f32 %v905, %v1019
    %v1033 = vadd.f32 %v906, %v1020
    %v1034 = vadd.f32 %v907, %v1021
    %v1035 = vrot.slane %v245, 2
    %v1036 = vrot.slane %v248, 2
    %v1037 = vsel %vm514, %v1035, %v1036
    %v1039 = vsel %vm205, %v1036, 0
    %1041 = vmatpush.msra.mxu0 0.0
    %1042 = vmatpush.msra.mxu0 0.0
    %1043 = vmatpush.msra.mxu0 0.0
    %1044 = vmatpush.msra.mxu0 0.0
    %1045 = vmatpush.msra.mxu0 0.0
    %1046 = vmatpush.msra.mxu0 0.0
    %1047 = vmatpush.msra.mxu0 0.0
    %1048 = vmatpush.msra.mxu0 0.0
    %1049 = vmatpush.msra.mxu0 0.0
    %1050 = vmatpush.msra.mxu0 0.0
    %1051 = vmatpush.msra.mxu0 0.0
    %1052 = vmatpush.msra.mxu0 0.0
    %1053 = vmatpush.msra.mxu0 0.0
    %1054 = vmatpush.msra.mxu0 0.0
    %1055 = vmatpush.msra.mxu0 %v1039
    %1056 = vmatpush.msra.mxu0 %v1037
    %1057 = vmatmul.f32.gmra.mxu0 %v348
    %v1058 = vpop.f32.mrf.mxu0
    %v1059 = vadd.f32 0.0, %v1058
    %1060 = vmatmul.f32.gmra.mxu0 %v351
    %v1061 = vpop.f32.mrf.mxu0
    %v1062 = vadd.f32 0.0, %v1061
    %1063 = vmatmul.f32.gmra.mxu0 %v354
    %v1064 = vpop.f32.mrf.mxu0
    %v1065 = vadd.f32 0.0, %v1064
    %1066 = vmatmul.f32.gmra.mxu0 %v357
    %v1067 = vpop.f32.mrf.mxu0
    %v1068 = vadd.f32 0.0, %v1067
    %1069 = vmatmul.f32.gmra.mxu0 %v360
    %v1070 = vpop.f32.mrf.mxu0
    %v1071 = vadd.f32 0.0, %v1070
    %1072 = vmatmul.f32.gmra.mxu0 %v363
    %v1073 = vpop.f32.mrf.mxu0
    %v1074 = vadd.f32 0.0, %v1073
    %1075 = vmatmul.f32.gmra.mxu0 %v366
    %v1076 = vpop.f32.mrf.mxu0
    %v1077 = vadd.f32 0.0, %v1076
    %1078 = vmatmul.f32.gmra.mxu0 %v369
    %v1079 = vpop.f32.mrf.mxu0
    %v1080 = vadd.f32 0.0, %v1079
    %1081 = vmatmul.f32.gmra.mxu0 %v372
    %v1082 = vpop.f32.mrf.mxu0
    %v1083 = vadd.f32 0.0, %v1082
    %1084 = vmatmul.f32.gmra.mxu0 %v375
    %v1085 = vpop.f32.mrf.mxu0
    %v1086 = vadd.f32 0.0, %v1085
    %1087 = vmatmul.f32.gmra.mxu0 %v378
    %v1088 = vpop.f32.mrf.mxu0
    %v1089 = vadd.f32 0.0, %v1088
    %1090 = vmatmul.f32.gmra.mxu0 %v381
    %v1091 = vpop.f32.mrf.mxu0
    %v1092 = vadd.f32 0.0, %v1091
    %1093 = vmatmul.f32.gmra.mxu0 %v384
    %v1094 = vpop.f32.mrf.mxu0
    %v1095 = vadd.f32 0.0, %v1094
    %1096 = vdwg.mxu0
    %v1097 = vmul.f32 %v1059, %v334
    %v1098 = vmul.f32 %v1062, %v335
    %v1099 = vmul.f32 %v1065, %v336
    %v1100 = vmul.f32 %v1068, %v337
    %v1101 = vmul.f32 %v1071, %v338
    %v1102 = vmul.f32 %v1074, %v339
    %v1103 = vmul.f32 %v1077, %v340
    %v1104 = vmul.f32 %v1080, %v341
    %v1105 = vmul.f32 %v1083, %v342
    %v1106 = vmul.f32 %v1086, %v343
    %v1107 = vmul.f32 %v1089, %v344
    %v1108 = vmul.f32 %v1092, %v345
    %v1109 = vmul.f32 %v1095, %v346
    %1110 = vadd.xlane.f32.xlu0 %v1097
    %v1111 = vpop.xlane.xlu0 %1110
    %1112 = vadd.xlane.f32.xlu0 %v1098
    %v1113 = vpop.xlane.xlu0 %1112
    %1114 = vadd.xlane.f32.xlu0 %v1099
    %v1115 = vpop.xlane.xlu0 %1114
    %1116 = vadd.xlane.f32.xlu0 %v1100
    %v1117 = vpop.xlane.xlu0 %1116
    %1118 = vadd.xlane.f32.xlu0 %v1101
    %v1119 = vpop.xlane.xlu0 %1118
    %1120 = vadd.xlane.f32.xlu0 %v1102
    %v1121 = vpop.xlane.xlu0 %1120
    %1122 = vadd.xlane.f32.xlu0 %v1103
    %v1123 = vpop.xlane.xlu0 %1122
    %1124 = vadd.xlane.f32.xlu0 %v1104
    %v1125 = vpop.xlane.xlu0 %1124
    %1126 = vadd.xlane.f32.xlu0 %v1105
    %v1127 = vpop.xlane.xlu0 %1126
    %1128 = vadd.xlane.f32.xlu0 %v1106
    %v1129 = vpop.xlane.xlu0 %1128
    %1130 = vadd.xlane.f32.xlu0 %v1107
    %v1131 = vpop.xlane.xlu0 %1130
    %1132 = vadd.xlane.f32.xlu0 %v1108
    %v1133 = vpop.xlane.xlu0 %1132
    %v1134 = vsel %vm481, %v1109, 0.0
    %1135 = vadd.xlane.f32.xlu0 %v1134
    %v1136 = vpop.xlane.xlu0 %1135
    %vm1137 = vcmp.eq.s32.totalorder %v73, 5
    %v1138 = vsel %vm1137, 1, 0
    %v1139 = vcvt.s32.f32 %v1138
    %v1140 = vmul.f32 %v1111, %v1139
    %v1141 = vmul.f32 %v1113, %v1139
    %v1142 = vmul.f32 %v1115, %v1139
    %v1143 = vmul.f32 %v1117, %v1139
    %v1144 = vmul.f32 %v1119, %v1139
    %v1145 = vmul.f32 %v1121, %v1139
    %v1146 = vmul.f32 %v1123, %v1139
    %v1147 = vmul.f32 %v1125, %v1139
    %v1148 = vmul.f32 %v1127, %v1139
    %v1149 = vmul.f32 %v1129, %v1139
    %v1150 = vmul.f32 %v1131, %v1139
    %v1151 = vmul.f32 %v1133, %v1139
    %v1152 = vmul.f32 %v1136, %v1139
    %v1153 = vadd.f32 %v1022, %v1140
    %v1154 = vadd.f32 %v1023, %v1141
    %v1155 = vadd.f32 %v1024, %v1142
    %v1156 = vadd.f32 %v1025, %v1143
    %v1157 = vadd.f32 %v1026, %v1144
    %v1158 = vadd.f32 %v1027, %v1145
    %v1159 = vadd.f32 %v1028, %v1146
    %v1160 = vadd.f32 %v1029, %v1147
    %v1161 = vadd.f32 %v1030, %v1148
    %v1162 = vadd.f32 %v1031, %v1149
    %v1163 = vadd.f32 %v1032, %v1150
    %v1164 = vadd.f32 %v1033, %v1151
    %v1165 = vadd.f32 %v1034, %v1152
    %v1166 = vrot.slane %v248, 4
    %v1167 = vrot.slane %v251, 4
    %v1168 = vsel %vm481, %v1166, %v1167
    %v1170 = vsel %vm205, %v1167, 0
    %1172 = vmatpush.msra.mxu0 0.0
    %1173 = vmatpush.msra.mxu0 0.0
    %1174 = vmatpush.msra.mxu0 0.0
    %1175 = vmatpush.msra.mxu0 0.0
    %1176 = vmatpush.msra.mxu0 0.0
    %1177 = vmatpush.msra.mxu0 0.0
    %1178 = vmatpush.msra.mxu0 0.0
    %1179 = vmatpush.msra.mxu0 0.0
    %1180 = vmatpush.msra.mxu0 0.0
    %1181 = vmatpush.msra.mxu0 0.0
    %1182 = vmatpush.msra.mxu0 0.0
    %1183 = vmatpush.msra.mxu0 0.0
    %1184 = vmatpush.msra.mxu0 0.0
    %1185 = vmatpush.msra.mxu0 0.0
    %1186 = vmatpush.msra.mxu0 %v1170
    %1187 = vmatpush.msra.mxu0 %v1168
    %1188 = vmatmul.f32.gmra.mxu0 %v348
    %v1189 = vpop.f32.mrf.mxu0
    %v1190 = vadd.f32 0.0, %v1189
    %1191 = vmatmul.f32.gmra.mxu0 %v351
    %v1192 = vpop.f32.mrf.mxu0
    %v1193 = vadd.f32 0.0, %v1192
    %1194 = vmatmul.f32.gmra.mxu0 %v354
    %v1195 = vpop.f32.mrf.mxu0
    %v1196 = vadd.f32 0.0, %v1195
    %1197 = vmatmul.f32.gmra.mxu0 %v357
    %v1198 = vpop.f32.mrf.mxu0
    %v1199 = vadd.f32 0.0, %v1198
    %1200 = vmatmul.f32.gmra.mxu0 %v360
    %v1201 = vpop.f32.mrf.mxu0
    %v1202 = vadd.f32 0.0, %v1201
    %1203 = vmatmul.f32.gmra.mxu0 %v363
    %v1204 = vpop.f32.mrf.mxu0
    %v1205 = vadd.f32 0.0, %v1204
    %1206 = vmatmul.f32.gmra.mxu0 %v366
    %v1207 = vpop.f32.mrf.mxu0
    %v1208 = vadd.f32 0.0, %v1207
    %1209 = vmatmul.f32.gmra.mxu0 %v369
    %v1210 = vpop.f32.mrf.mxu0
    %v1211 = vadd.f32 0.0, %v1210
    %1212 = vmatmul.f32.gmra.mxu0 %v372
    %v1213 = vpop.f32.mrf.mxu0
    %v1214 = vadd.f32 0.0, %v1213
    %1215 = vmatmul.f32.gmra.mxu0 %v375
    %v1216 = vpop.f32.mrf.mxu0
    %v1217 = vadd.f32 0.0, %v1216
    %1218 = vmatmul.f32.gmra.mxu0 %v378
    %v1219 = vpop.f32.mrf.mxu0
    %v1220 = vadd.f32 0.0, %v1219
    %1221 = vmatmul.f32.gmra.mxu0 %v381
    %v1222 = vpop.f32.mrf.mxu0
    %v1223 = vadd.f32 0.0, %v1222
    %1224 = vmatmul.f32.gmra.mxu0 %v384
    %v1225 = vpop.f32.mrf.mxu0
    %v1226 = vadd.f32 0.0, %v1225
    %1227 = vdwg.mxu0
    %v1228 = vmul.f32 %v1190, %v334
    %v1229 = vmul.f32 %v1193, %v335
    %v1230 = vmul.f32 %v1196, %v336
    %v1231 = vmul.f32 %v1199, %v337
    %v1232 = vmul.f32 %v1202, %v338
    %v1233 = vmul.f32 %v1205, %v339
    %v1234 = vmul.f32 %v1208, %v340
    %v1235 = vmul.f32 %v1211, %v341
    %v1236 = vmul.f32 %v1214, %v342
    %v1237 = vmul.f32 %v1217, %v343
    %v1238 = vmul.f32 %v1220, %v344
    %v1239 = vmul.f32 %v1223, %v345
    %v1240 = vmul.f32 %v1226, %v346
    %1241 = vadd.xlane.f32.xlu0 %v1228
    %v1242 = vpop.xlane.xlu0 %1241
    %1243 = vadd.xlane.f32.xlu0 %v1229
    %v1244 = vpop.xlane.xlu0 %1243
    %1245 = vadd.xlane.f32.xlu0 %v1230
    %v1246 = vpop.xlane.xlu0 %1245
    %1247 = vadd.xlane.f32.xlu0 %v1231
    %v1248 = vpop.xlane.xlu0 %1247
    %1249 = vadd.xlane.f32.xlu0 %v1232
    %v1250 = vpop.xlane.xlu0 %1249
    %1251 = vadd.xlane.f32.xlu0 %v1233
    %v1252 = vpop.xlane.xlu0 %1251
    %1253 = vadd.xlane.f32.xlu0 %v1234
    %v1254 = vpop.xlane.xlu0 %1253
    %1255 = vadd.xlane.f32.xlu0 %v1235
    %v1256 = vpop.xlane.xlu0 %1255
    %1257 = vadd.xlane.f32.xlu0 %v1236
    %v1258 = vpop.xlane.xlu0 %1257
    %1259 = vadd.xlane.f32.xlu0 %v1237
    %v1260 = vpop.xlane.xlu0 %1259
    %1261 = vadd.xlane.f32.xlu0 %v1238
    %v1262 = vpop.xlane.xlu0 %1261
    %1263 = vadd.xlane.f32.xlu0 %v1239
    %v1264 = vpop.xlane.xlu0 %1263
    %v1265 = vsel %vm481, %v1240, 0.0
    %1266 = vadd.xlane.f32.xlu0 %v1265
    %v1267 = vpop.xlane.xlu0 %1266
    %vm1268 = vcmp.eq.s32.totalorder %v73, 6
    %v1269 = vsel %vm1268, 1, 0
    %v1270 = vcvt.s32.f32 %v1269
    %v1271 = vmul.f32 %v1242, %v1270
    %v1272 = vmul.f32 %v1244, %v1270
    %v1273 = vmul.f32 %v1246, %v1270
    %v1274 = vmul.f32 %v1248, %v1270
    %v1275 = vmul.f32 %v1250, %v1270
    %v1276 = vmul.f32 %v1252, %v1270
    %v1277 = vmul.f32 %v1254, %v1270
    %v1278 = vmul.f32 %v1256, %v1270
    %v1279 = vmul.f32 %v1258, %v1270
    %v1280 = vmul.f32 %v1260, %v1270
    %v1281 = vmul.f32 %v1262, %v1270
    %v1282 = vmul.f32 %v1264, %v1270
    %v1283 = vmul.f32 %v1267, %v1270
    %v1284 = vadd.f32 %v1153, %v1271
    %v1285 = vadd.f32 %v1154, %v1272
    %v1286 = vadd.f32 %v1155, %v1273
    %v1287 = vadd.f32 %v1156, %v1274
    %v1288 = vadd.f32 %v1157, %v1275
    %v1289 = vadd.f32 %v1158, %v1276
    %v1290 = vadd.f32 %v1159, %v1277
    %v1291 = vadd.f32 %v1160, %v1278
    %v1292 = vadd.f32 %v1161, %v1279
    %v1293 = vadd.f32 %v1162, %v1280
    %v1294 = vadd.f32 %v1163, %v1281
    %v1295 = vadd.f32 %v1164, %v1282
    %v1296 = vadd.f32 %v1165, %v1283
    %v1297 = vrot.slane %v251, 6
    %v1298 = vrot.slane %v254, 6
    %v1299 = vsel %vm205, %v1297, %v1298
    %v1301 = vsel %vm205, %v1298, 0
    %1303 = vmatpush.msra.mxu0 0.0
    %1304 = vmatpush.msra.mxu0 0.0
    %1305 = vmatpush.msra.mxu0 0.0
    %1306 = vmatpush.msra.mxu0 0.0
    %1307 = vmatpush.msra.mxu0 0.0
    %1308 = vmatpush.msra.mxu0 0.0
    %1309 = vmatpush.msra.mxu0 0.0
    %1310 = vmatpush.msra.mxu0 0.0
    %1311 = vmatpush.msra.mxu0 0.0
    %1312 = vmatpush.msra.mxu0 0.0
    %1313 = vmatpush.msra.mxu0 0.0
    %1314 = vmatpush.msra.mxu0 0.0
    %1315 = vmatpush.msra.mxu0 0.0
    %1316 = vmatpush.msra.mxu0 0.0
    %1317 = vmatpush.msra.mxu0 %v1301
    %1318 = vmatpush.msra.mxu0 %v1299
    %1319 = vmatmul.f32.gmra.mxu0 %v348
    %v1320 = vpop.f32.mrf.mxu0
    %v1321 = vadd.f32 0.0, %v1320
    %1322 = vmatmul.f32.gmra.mxu0 %v351
    %v1323 = vpop.f32.mrf.mxu0
    %v1324 = vadd.f32 0.0, %v1323
    %1325 = vmatmul.f32.gmra.mxu0 %v354
    %v1326 = vpop.f32.mrf.mxu0
    %v1327 = vadd.f32 0.0, %v1326
    %1328 = vmatmul.f32.gmra.mxu0 %v357
    %v1329 = vpop.f32.mrf.mxu0
    %v1330 = vadd.f32 0.0, %v1329
    %1331 = vmatmul.f32.gmra.mxu0 %v360
    %v1332 = vpop.f32.mrf.mxu0
    %v1333 = vadd.f32 0.0, %v1332
    %1334 = vmatmul.f32.gmra.mxu0 %v363
    %v1335 = vpop.f32.mrf.mxu0
    %v1336 = vadd.f32 0.0, %v1335
    %1337 = vmatmul.f32.gmra.mxu0 %v366
    %v1338 = vpop.f32.mrf.mxu0
    %v1339 = vadd.f32 0.0, %v1338
    %1340 = vmatmul.f32.gmra.mxu0 %v369
    %v1341 = vpop.f32.mrf.mxu0
    %v1342 = vadd.f32 0.0, %v1341
    %1343 = vmatmul.f32.gmra.mxu0 %v372
    %v1344 = vpop.f32.mrf.mxu0
    %v1345 = vadd.f32 0.0, %v1344
    %1346 = vmatmul.f32.gmra.mxu0 %v375
    %v1347 = vpop.f32.mrf.mxu0
    %v1348 = vadd.f32 0.0, %v1347
    %1349 = vmatmul.f32.gmra.mxu0 %v378
    %v1350 = vpop.f32.mrf.mxu0
    %v1351 = vadd.f32 0.0, %v1350
    %1352 = vmatmul.f32.gmra.mxu0 %v381
    %v1353 = vpop.f32.mrf.mxu0
    %v1354 = vadd.f32 0.0, %v1353
    %1355 = vmatmul.f32.gmra.mxu0 %v384
    %v1356 = vpop.f32.mrf.mxu0
    %v1357 = vadd.f32 0.0, %v1356
    %1358 = vdwg.mxu0
    %v1359 = vmul.f32 %v1321, %v334
    %v1360 = vmul.f32 %v1324, %v335
    %v1361 = vmul.f32 %v1327, %v336
    %v1362 = vmul.f32 %v1330, %v337
    %v1363 = vmul.f32 %v1333, %v338
    %v1364 = vmul.f32 %v1336, %v339
    %v1365 = vmul.f32 %v1339, %v340
    %v1366 = vmul.f32 %v1342, %v341
    %v1367 = vmul.f32 %v1345, %v342
    %v1368 = vmul.f32 %v1348, %v343
    %v1369 = vmul.f32 %v1351, %v344
    %v1370 = vmul.f32 %v1354, %v345
    %v1371 = vmul.f32 %v1357, %v346
    %1372 = vadd.xlane.f32.xlu0 %v1359
    %v1373 = vpop.xlane.xlu0 %1372
    %1374 = vadd.xlane.f32.xlu0 %v1360
    %v1375 = vpop.xlane.xlu0 %1374
    %1376 = vadd.xlane.f32.xlu0 %v1361
    %v1377 = vpop.xlane.xlu0 %1376
    %1378 = vadd.xlane.f32.xlu0 %v1362
    %v1379 = vpop.xlane.xlu0 %1378
    %1380 = vadd.xlane.f32.xlu0 %v1363
    %v1381 = vpop.xlane.xlu0 %1380
    %1382 = vadd.xlane.f32.xlu0 %v1364
    %v1383 = vpop.xlane.xlu0 %1382
    %1384 = vadd.xlane.f32.xlu0 %v1365
    %v1385 = vpop.xlane.xlu0 %1384
    %1386 = vadd.xlane.f32.xlu0 %v1366
    %v1387 = vpop.xlane.xlu0 %1386
    %1388 = vadd.xlane.f32.xlu0 %v1367
    %v1389 = vpop.xlane.xlu0 %1388
    %1390 = vadd.xlane.f32.xlu0 %v1368
    %v1391 = vpop.xlane.xlu0 %1390
    %1392 = vadd.xlane.f32.xlu0 %v1369
    %v1393 = vpop.xlane.xlu0 %1392
    %1394 = vadd.xlane.f32.xlu0 %v1370
    %v1395 = vpop.xlane.xlu0 %1394
    %v1396 = vsel %vm481, %v1371, 0.0
    %1397 = vadd.xlane.f32.xlu0 %v1396
    %v1398 = vpop.xlane.xlu0 %1397
    %vm1399 = vcmp.eq.s32.totalorder %v73, 7
    %v1400 = vsel %vm1399, 1, 0
    %v1401 = vcvt.s32.f32 %v1400
    %v1402 = vmul.f32 %v1373, %v1401
    %v1403 = vmul.f32 %v1375, %v1401
    %v1404 = vmul.f32 %v1377, %v1401
    %v1405 = vmul.f32 %v1379, %v1401
    %v1406 = vmul.f32 %v1381, %v1401
    %v1407 = vmul.f32 %v1383, %v1401
    %v1408 = vmul.f32 %v1385, %v1401
    %v1409 = vmul.f32 %v1387, %v1401
    %v1410 = vmul.f32 %v1389, %v1401
    %v1411 = vmul.f32 %v1391, %v1401
    %v1412 = vmul.f32 %v1393, %v1401
    %v1413 = vmul.f32 %v1395, %v1401
    %v1414 = vmul.f32 %v1398, %v1401
    %v1415 = vadd.f32 %v1284, %v1402
    %v1416 = vadd.f32 %v1285, %v1403
    %v1417 = vadd.f32 %v1286, %v1404
    %v1418 = vadd.f32 %v1287, %v1405
    %v1419 = vadd.f32 %v1288, %v1406
    %v1420 = vadd.f32 %v1289, %v1407
    %v1421 = vadd.f32 %v1290, %v1408
    %v1422 = vadd.f32 %v1291, %v1409
    %v1423 = vadd.f32 %v1292, %v1410
    %v1424 = vadd.f32 %v1293, %v1411
    %v1425 = vadd.f32 %v1294, %v1412
    %v1426 = vadd.f32 %v1295, %v1413
    %v1427 = vadd.f32 %v1296, %v1414
    %v1428 = vsel %vm205, %v260, 0
    %1430 = vmatpush.msra.mxu0 0.0
    %1431 = vmatpush.msra.mxu0 0.0
    %1432 = vmatpush.msra.mxu0 0.0
    %1433 = vmatpush.msra.mxu0 0.0
    %1434 = vmatpush.msra.mxu0 0.0
    %1435 = vmatpush.msra.mxu0 0.0
    %1436 = vmatpush.msra.mxu0 0.0
    %1437 = vmatpush.msra.mxu0 0.0
    %1438 = vmatpush.msra.mxu0 0.0
    %1439 = vmatpush.msra.mxu0 0.0
    %1440 = vmatpush.msra.mxu0 0.0
    %1441 = vmatpush.msra.mxu0 0.0
    %1442 = vmatpush.msra.mxu0 0.0
    %1443 = vmatpush.msra.mxu0 0.0
    %1444 = vmatpush.msra.mxu0 %v1428
    %1445 = vmatpush.msra.mxu0 %v257
    %1446 = vmatmul.f32.gmra.mxu0 %v348
    %v1447 = vpop.f32.mrf.mxu0
    %v1448 = vadd.f32 0.0, %v1447
    %1449 = vmatmul.f32.gmra.mxu0 %v351
    %v1450 = vpop.f32.mrf.mxu0
    %v1451 = vadd.f32 0.0, %v1450
    %1452 = vmatmul.f32.gmra.mxu0 %v354
    %v1453 = vpop.f32.mrf.mxu0
    %v1454 = vadd.f32 0.0, %v1453
    %1455 = vmatmul.f32.gmra.mxu0 %v357
    %v1456 = vpop.f32.mrf.mxu0
    %v1457 = vadd.f32 0.0, %v1456
    %1458 = vmatmul.f32.gmra.mxu0 %v360
    %v1459 = vpop.f32.mrf.mxu0
    %v1460 = vadd.f32 0.0, %v1459
    %1461 = vmatmul.f32.gmra.mxu0 %v363
    %v1462 = vpop.f32.mrf.mxu0
    %v1463 = vadd.f32 0.0, %v1462
    %1464 = vmatmul.f32.gmra.mxu0 %v366
    %v1465 = vpop.f32.mrf.mxu0
    %v1466 = vadd.f32 0.0, %v1465
    %1467 = vmatmul.f32.gmra.mxu0 %v369
    %v1468 = vpop.f32.mrf.mxu0
    %v1469 = vadd.f32 0.0, %v1468
    %1470 = vmatmul.f32.gmra.mxu0 %v372
    %v1471 = vpop.f32.mrf.mxu0
    %v1472 = vadd.f32 0.0, %v1471
    %1473 = vmatmul.f32.gmra.mxu0 %v375
    %v1474 = vpop.f32.mrf.mxu0
    %v1475 = vadd.f32 0.0, %v1474
    %1476 = vmatmul.f32.gmra.mxu0 %v378
    %v1477 = vpop.f32.mrf.mxu0
    %v1478 = vadd.f32 0.0, %v1477
    %1479 = vmatmul.f32.gmra.mxu0 %v381
    %v1480 = vpop.f32.mrf.mxu0
    %v1481 = vadd.f32 0.0, %v1480
    %1482 = vmatmul.f32.gmra.mxu0 %v384
    %v1483 = vpop.f32.mrf.mxu0
    %v1484 = vadd.f32 0.0, %v1483
    %1485 = vdwg.mxu0
    %v1486 = vmul.f32 %v1448, %v334
    %v1487 = vmul.f32 %v1451, %v335
    %v1488 = vmul.f32 %v1454, %v336
    %v1489 = vmul.f32 %v1457, %v337
    %v1490 = vmul.f32 %v1460, %v338
    %v1491 = vmul.f32 %v1463, %v339
    %v1492 = vmul.f32 %v1466, %v340
    %v1493 = vmul.f32 %v1469, %v341
    %v1494 = vmul.f32 %v1472, %v342
    %v1495 = vmul.f32 %v1475, %v343
    %v1496 = vmul.f32 %v1478, %v344
    %v1497 = vmul.f32 %v1481, %v345
    %v1498 = vmul.f32 %v1484, %v346
    %1499 = vadd.xlane.f32.xlu0 %v1486
    %v1500 = vpop.xlane.xlu0 %1499
    %1501 = vadd.xlane.f32.xlu0 %v1487
    %v1502 = vpop.xlane.xlu0 %1501
    %1503 = vadd.xlane.f32.xlu0 %v1488
    %v1504 = vpop.xlane.xlu0 %1503
    %1505 = vadd.xlane.f32.xlu0 %v1489
    %v1506 = vpop.xlane.xlu0 %1505
    %1507 = vadd.xlane.f32.xlu0 %v1490
    %v1508 = vpop.xlane.xlu0 %1507
    %1509 = vadd.xlane.f32.xlu0 %v1491
    %v1510 = vpop.xlane.xlu0 %1509
    %1511 = vadd.xlane.f32.xlu0 %v1492
    %v1512 = vpop.xlane.xlu0 %1511
    %1513 = vadd.xlane.f32.xlu0 %v1493
    %v1514 = vpop.xlane.xlu0 %1513
    %1515 = vadd.xlane.f32.xlu0 %v1494
    %v1516 = vpop.xlane.xlu0 %1515
    %1517 = vadd.xlane.f32.xlu0 %v1495
    %v1518 = vpop.xlane.xlu0 %1517
    %1519 = vadd.xlane.f32.xlu0 %v1496
    %v1520 = vpop.xlane.xlu0 %1519
    %1521 = vadd.xlane.f32.xlu0 %v1497
    %v1522 = vpop.xlane.xlu0 %1521
    %v1523 = vsel %vm481, %v1498, 0.0
    %1524 = vadd.xlane.f32.xlu0 %v1523
    %v1525 = vpop.xlane.xlu0 %1524
    %vm1526 = vcmp.eq.s32.totalorder %v73, 8
    %v1527 = vsel %vm1526, 1, 0
    %v1528 = vcvt.s32.f32 %v1527
    %v1529 = vmul.f32 %v1500, %v1528
    %v1530 = vmul.f32 %v1502, %v1528
    %v1531 = vmul.f32 %v1504, %v1528
    %v1532 = vmul.f32 %v1506, %v1528
    %v1533 = vmul.f32 %v1508, %v1528
    %v1534 = vmul.f32 %v1510, %v1528
    %v1535 = vmul.f32 %v1512, %v1528
    %v1536 = vmul.f32 %v1514, %v1528
    %v1537 = vmul.f32 %v1516, %v1528
    %v1538 = vmul.f32 %v1518, %v1528
    %v1539 = vmul.f32 %v1520, %v1528
    %v1540 = vmul.f32 %v1522, %v1528
    %v1541 = vmul.f32 %v1525, %v1528
    %v1542 = vadd.f32 %v1415, %v1529
    %v1543 = vadd.f32 %v1416, %v1530
    %v1544 = vadd.f32 %v1417, %v1531
    %v1545 = vadd.f32 %v1418, %v1532
    %v1546 = vadd.f32 %v1419, %v1533
    %v1547 = vadd.f32 %v1420, %v1534
    %v1548 = vadd.f32 %v1421, %v1535
    %v1549 = vadd.f32 %v1422, %v1536
    %v1550 = vadd.f32 %v1423, %v1537
    %v1551 = vadd.f32 %v1424, %v1538
    %v1552 = vadd.f32 %v1425, %v1539
    %v1553 = vadd.f32 %v1426, %v1540
    %v1554 = vadd.f32 %v1427, %v1541
    %v1555 = vrot.slane %v260, 2
    %v1556 = vrot.slane %v263, 2
    %v1557 = vsel %vm514, %v1555, %v1556
    %v1559 = vsel %vm205, %v1556, 0
    %1561 = vmatpush.msra.mxu0 0.0
    %1562 = vmatpush.msra.mxu0 0.0
    %1563 = vmatpush.msra.mxu0 0.0
    %1564 = vmatpush.msra.mxu0 0.0
    %1565 = vmatpush.msra.mxu0 0.0
    %1566 = vmatpush.msra.mxu0 0.0
    %1567 = vmatpush.msra.mxu0 0.0
    %1568 = vmatpush.msra.mxu0 0.0
    %1569 = vmatpush.msra.mxu0 0.0
    %1570 = vmatpush.msra.mxu0 0.0
    %1571 = vmatpush.msra.mxu0 0.0
    %1572 = vmatpush.msra.mxu0 0.0
    %1573 = vmatpush.msra.mxu0 0.0
    %1574 = vmatpush.msra.mxu0 0.0
    %1575 = vmatpush.msra.mxu0 %v1559
    %1576 = vmatpush.msra.mxu0 %v1557
    %1577 = vmatmul.f32.gmra.mxu0 %v348
    %v1578 = vpop.f32.mrf.mxu0
    %v1579 = vadd.f32 0.0, %v1578
    %1580 = vmatmul.f32.gmra.mxu0 %v351
    %v1581 = vpop.f32.mrf.mxu0
    %v1582 = vadd.f32 0.0, %v1581
    %1583 = vmatmul.f32.gmra.mxu0 %v354
    %v1584 = vpop.f32.mrf.mxu0
    %v1585 = vadd.f32 0.0, %v1584
    %1586 = vmatmul.f32.gmra.mxu0 %v357
    %v1587 = vpop.f32.mrf.mxu0
    %v1588 = vadd.f32 0.0, %v1587
    %1589 = vmatmul.f32.gmra.mxu0 %v360
    %v1590 = vpop.f32.mrf.mxu0
    %v1591 = vadd.f32 0.0, %v1590
    %1592 = vmatmul.f32.gmra.mxu0 %v363
    %v1593 = vpop.f32.mrf.mxu0
    %v1594 = vadd.f32 0.0, %v1593
    %1595 = vmatmul.f32.gmra.mxu0 %v366
    %v1596 = vpop.f32.mrf.mxu0
    %v1597 = vadd.f32 0.0, %v1596
    %1598 = vmatmul.f32.gmra.mxu0 %v369
    %v1599 = vpop.f32.mrf.mxu0
    %v1600 = vadd.f32 0.0, %v1599
    %1601 = vmatmul.f32.gmra.mxu0 %v372
    %v1602 = vpop.f32.mrf.mxu0
    %v1603 = vadd.f32 0.0, %v1602
    %1604 = vmatmul.f32.gmra.mxu0 %v375
    %v1605 = vpop.f32.mrf.mxu0
    %v1606 = vadd.f32 0.0, %v1605
    %1607 = vmatmul.f32.gmra.mxu0 %v378
    %v1608 = vpop.f32.mrf.mxu0
    %v1609 = vadd.f32 0.0, %v1608
    %1610 = vmatmul.f32.gmra.mxu0 %v381
    %v1611 = vpop.f32.mrf.mxu0
    %v1612 = vadd.f32 0.0, %v1611
    %1613 = vmatmul.f32.gmra.mxu0 %v384
    %v1614 = vpop.f32.mrf.mxu0
    %v1615 = vadd.f32 0.0, %v1614
    %1616 = vdwg.mxu0
    %v1617 = vmul.f32 %v1579, %v334
    %v1618 = vmul.f32 %v1582, %v335
    %v1619 = vmul.f32 %v1585, %v336
    %v1620 = vmul.f32 %v1588, %v337
    %v1621 = vmul.f32 %v1591, %v338
    %v1622 = vmul.f32 %v1594, %v339
    %v1623 = vmul.f32 %v1597, %v340
    %v1624 = vmul.f32 %v1600, %v341
    %v1625 = vmul.f32 %v1603, %v342
    %v1626 = vmul.f32 %v1606, %v343
    %v1627 = vmul.f32 %v1609, %v344
    %v1628 = vmul.f32 %v1612, %v345
    %v1629 = vmul.f32 %v1615, %v346
    %1630 = vadd.xlane.f32.xlu0 %v1617
    %v1631 = vpop.xlane.xlu0 %1630
    %1632 = vadd.xlane.f32.xlu0 %v1618
    %v1633 = vpop.xlane.xlu0 %1632
    %1634 = vadd.xlane.f32.xlu0 %v1619
    %v1635 = vpop.xlane.xlu0 %1634
    %1636 = vadd.xlane.f32.xlu0 %v1620
    %v1637 = vpop.xlane.xlu0 %1636
    %1638 = vadd.xlane.f32.xlu0 %v1621
    %v1639 = vpop.xlane.xlu0 %1638
    %1640 = vadd.xlane.f32.xlu0 %v1622
    %v1641 = vpop.xlane.xlu0 %1640
    %1642 = vadd.xlane.f32.xlu0 %v1623
    %v1643 = vpop.xlane.xlu0 %1642
    %1644 = vadd.xlane.f32.xlu0 %v1624
    %v1645 = vpop.xlane.xlu0 %1644
    %1646 = vadd.xlane.f32.xlu0 %v1625
    %v1647 = vpop.xlane.xlu0 %1646
    %1648 = vadd.xlane.f32.xlu0 %v1626
    %v1649 = vpop.xlane.xlu0 %1648
    %1650 = vadd.xlane.f32.xlu0 %v1627
    %v1651 = vpop.xlane.xlu0 %1650
    %1652 = vadd.xlane.f32.xlu0 %v1628
    %v1653 = vpop.xlane.xlu0 %1652
    %v1654 = vsel %vm481, %v1629, 0.0
    %1655 = vadd.xlane.f32.xlu0 %v1654
    %v1656 = vpop.xlane.xlu0 %1655
    %vm1657 = vcmp.eq.s32.totalorder %v73, 9
    %v1658 = vsel %vm1657, 1, 0
    %v1659 = vcvt.s32.f32 %v1658
    %v1660 = vmul.f32 %v1631, %v1659
    %v1661 = vmul.f32 %v1633, %v1659
    %v1662 = vmul.f32 %v1635, %v1659
    %v1663 = vmul.f32 %v1637, %v1659
    %v1664 = vmul.f32 %v1639, %v1659
    %v1665 = vmul.f32 %v1641, %v1659
    %v1666 = vmul.f32 %v1643, %v1659
    %v1667 = vmul.f32 %v1645, %v1659
    %v1668 = vmul.f32 %v1647, %v1659
    %v1669 = vmul.f32 %v1649, %v1659
    %v1670 = vmul.f32 %v1651, %v1659
    %v1671 = vmul.f32 %v1653, %v1659
    %v1672 = vmul.f32 %v1656, %v1659
    %v1673 = vadd.f32 %v1542, %v1660
    %v1674 = vadd.f32 %v1543, %v1661
    %v1675 = vadd.f32 %v1544, %v1662
    %v1676 = vadd.f32 %v1545, %v1663
    %v1677 = vadd.f32 %v1546, %v1664
    %v1678 = vadd.f32 %v1547, %v1665
    %v1679 = vadd.f32 %v1548, %v1666
    %v1680 = vadd.f32 %v1549, %v1667
    %v1681 = vadd.f32 %v1550, %v1668
    %v1682 = vadd.f32 %v1551, %v1669
    %v1683 = vadd.f32 %v1552, %v1670
    %v1684 = vadd.f32 %v1553, %v1671
    %v1685 = vadd.f32 %v1554, %v1672
    %vm1686 = vcmp.gt.f32.partialorder %v1673, 0.0
    %vm1687 = vcmp.gt.f32.partialorder %v1674, 0.0
    %vm1688 = vcmp.gt.f32.partialorder %v1675, 0.0
    %vm1689 = vcmp.gt.f32.partialorder %v1676, 0.0
    %vm1690 = vcmp.gt.f32.partialorder %v1677, 0.0
    %vm1691 = vcmp.gt.f32.partialorder %v1678, 0.0
    %vm1692 = vcmp.gt.f32.partialorder %v1679, 0.0
    %vm1693 = vcmp.gt.f32.partialorder %v1680, 0.0
    %vm1694 = vcmp.gt.f32.partialorder %v1681, 0.0
    %vm1695 = vcmp.gt.f32.partialorder %v1682, 0.0
    %vm1696 = vcmp.gt.f32.partialorder %v1683, 0.0
    %vm1697 = vcmp.gt.f32.partialorder %v1684, 0.0
    %vm1698 = vcmp.gt.f32.partialorder %v1685, 0.0
    %v1699 = vmul.f32 %v1673, 0.2
    %v1700 = vmul.f32 %v1674, 0.2
    %v1701 = vmul.f32 %v1675, 0.2
    %v1702 = vmul.f32 %v1676, 0.2
    %v1703 = vmul.f32 %v1677, 0.2
    %v1704 = vmul.f32 %v1678, 0.2
    %v1705 = vmul.f32 %v1679, 0.2
    %v1706 = vmul.f32 %v1680, 0.2
    %v1707 = vmul.f32 %v1681, 0.2
    %v1708 = vmul.f32 %v1682, 0.2
    %v1709 = vmul.f32 %v1683, 0.2
    %v1710 = vmul.f32 %v1684, 0.2
    %v1711 = vmul.f32 %v1685, 0.2
    %v1712 = vsel %vm1686, %v1673, %v1699
    %v1713 = vsel %vm1687, %v1674, %v1700
    %v1714 = vsel %vm1688, %v1675, %v1701
    %v1715 = vsel %vm1689, %v1676, %v1702
    %v1716 = vsel %vm1690, %v1677, %v1703
    %v1717 = vsel %vm1691, %v1678, %v1704
    %v1718 = vsel %vm1692, %v1679, %v1705
    %v1719 = vsel %vm1693, %v1680, %v1706
    %v1720 = vsel %vm1694, %v1681, %v1707
    %v1721 = vsel %vm1695, %v1682, %v1708
    %v1722 = vsel %vm1696, %v1683, %v1709
    %v1723 = vsel %vm1697, %v1684, %v1710
    %v1724 = vsel %vm1698, %v1685, %v1711
    %v1725 = vsel %vm165, %v1712, -inf
    %vm1726 = vcmask 74752
    %v1727 = vsel %vm1726, %v1713, -inf
    %v1728 = vmax.f32 %v1725, %v1727
    %v1729 = vrot.slane %v1728, 4
    %v1730 = vmax.f32 %v1728, %v1729
    %v1731 = vrot.slane %v1730, 2
    %v1732 = vmax.f32 %v1730, %v1731
    %v1733 = vrot.slane %v1732, 1
    %v1734 = vmax.f32 %v1732, %v1733
    %v1735 = vsub.f32 %v1712, %v1734
    %v1736 = vsub.f32 %v1713, %v1734
    %v1737 = vmul.f32 %v1735, 1.442695
    %v1738 = vpow.pop %v1737
    %v1739 = vmul.f32 %v1736, 1.442695
    %v1740 = vpow.pop %v1739
    %v1741 = vsel %vm165, %v1738, 0.0
    %v1742 = vsel %vm1726, %v1740, 0.0
    %v1743 = vadd.f32 %v1741, %v1742
    %v1744 = vrot.slane %v1743, 4
    %v1745 = vadd.f32 %v1743, %v1744
    %v1746 = vrot.slane %v1745, 2
    %v1747 = vadd.f32 %v1745, %v1746
    %v1748 = vrot.slane %v1747, 1
    %v1749 = vadd.f32 %v1747, %v1748
    %v1750 = vrcp.pop %v1749
    %v1751 = vmul.f32 %v1738, %v1750
    %v1752 = vmul.f32 %v1740, %v1750
    %v1754 = vsel %vm165, %v1751, 0
    %v1757 = vsel %vm165, %v1752, 0
    %1759 = vmatpush.msra.mxu0 0.0
    %1760 = vmatpush.msra.mxu0 0.0
    %1761 = vmatpush.msra.mxu0 0.0
    %1762 = vmatpush.msra.mxu0 0.0
    %1763 = vmatpush.msra.mxu0 0.0
    %1764 = vmatpush.msra.mxu0 0.0
    %1765 = vmatpush.msra.mxu0 0.0
    %1766 = vmatpush.msra.mxu0 0.0
    %1767 = vmatpush.msra.mxu0 0.0
    %1768 = vmatpush.msra.mxu0 0.0
    %1769 = vmatpush.msra.mxu0 0.0
    %1770 = vmatpush.msra.mxu0 0.0
    %1771 = vmatpush.msra.mxu0 0.0
    %1772 = vmatpush.msra.mxu0 0.0
    %1773 = vmatpush.msra.mxu0 %v386
    %1774 = vmatpush.msra.mxu0 %v227
    %1775 = vmatmul.f32.gmra.mxu0 %v1754
    %v1776 = vpop.f32.mrf.mxu0
    %v1777 = vadd.f32 0.0, %v1776
    %1778 = vmatmul.f32.gmra.mxu0 %v1757
    %v1779 = vpop.f32.mrf.mxu0
    %v1780 = vadd.f32 0.0, %v1779
    %1781 = vdwg.mxu0
    %vm1782 = vcmp.gt.f32.partialorder %v1777, 0.0
    %vm1783 = vcmp.gt.f32.partialorder %v1780, 0.0
    %v1784 = vmin.f32 %v1777, 0.0
    %v1785 = vmin.f32 %v1780, 0.0
    %v1786 = vmul.f32 %v1784, 1.442695
    %v1787 = vpow.pop %v1786
    %v1788 = vmul.f32 %v1785, 1.442695
    %v1789 = vpow.pop %v1788
    %v1790 = vsub.f32 %v1787, 1.0
    %v1791 = vsub.f32 %v1789, 1.0
    %v1792 = vsel %vm1782, %v1777, %v1790
    %v1793 = vsel %vm1783, %v1780, %v1791
    %1794 = vst [vmem:[#allocation5] sm:$0xff] %v1792
    %1795 = vst [vmem:[#allocation5 + $0x8] sm:$0x3] %v1793
    %vm1796 = vcmask 80898
    %v1797 = vsel %vm1796, %v1713, -inf
    %vm1798 = vcmask 76800
    %v1799 = vsel %vm1798, %v1714, -inf
    %v1800 = vmax.f32 %v1797, %v1799
    %v1801 = vrot.slane %v1800, 4
    %v1802 = vmax.f32 %v1800, %v1801
    %v1803 = vrot.slane %v1802, 2
    %v1804 = vmax.f32 %v1802, %v1803
    %v1805 = vrot.slane %v1804, 1
    %v1806 = vmax.f32 %v1804, %v1805
    %v1807 = vsub.f32 %v1713, %v1806
    %v1808 = vsub.f32 %v1714, %v1806
    %v1809 = vmul.f32 %v1807, 1.442695
    %v1810 = vpow.pop %v1809
    %v1811 = vmul.f32 %v1808, 1.442695
    %v1812 = vpow.pop %v1811
    %v1815 = vrot.slane %v1810, 2
    %v1816 = vrot.slane %v1812, 2
    %v1817 = vsel %vm514, %v1815, %v1816
    %v1820 = vsel %vm165, %v1817, 0.0
    %v1821 = vsel %vm1726, %v1816, 0.0
    %v1822 = vadd.f32 %v1820, %v1821
    %v1823 = vrot.slane %v1822, 4
    %v1824 = vadd.f32 %v1822, %v1823
    %v1825 = vrot.slane %v1824, 2
    %v1826 = vadd.f32 %v1824, %v1825
    %v1827 = vrot.slane %v1826, 1
    %v1828 = vadd.f32 %v1826, %v1827
    %v1829 = vrcp.pop %v1828
    %v1830 = vmul.f32 %v1810, %v1829
    %v1831 = vmul.f32 %v1812, %v1829
    %v1834 = vrot.slane %v1830, 2
    %v1835 = vrot.slane %v1831, 2
    %v1836 = vsel %vm514, %v1834, %v1835
    %v1837 = vsel %vm165, %v1836, 0
    %v1839 = vsel %vm165, %v1835, 0
    %1841 = vmatpush.msra.mxu0 0.0
    %1842 = vmatpush.msra.mxu0 0.0
    %1843 = vmatpush.msra.mxu0 0.0
    %1844 = vmatpush.msra.mxu0 0.0
    %1845 = vmatpush.msra.mxu0 0.0
    %1846 = vmatpush.msra.mxu0 0.0
    %1847 = vmatpush.msra.mxu0 0.0
    %1848 = vmatpush.msra.mxu0 0.0
    %1849 = vmatpush.msra.mxu0 0.0
    %1850 = vmatpush.msra.mxu0 0.0
    %1851 = vmatpush.msra.mxu0 0.0
    %1852 = vmatpush.msra.mxu0 0.0
    %1853 = vmatpush.msra.mxu0 0.0
    %1854 = vmatpush.msra.mxu0 0.0
    %1855 = vmatpush.msra.mxu0 %v519
    %1856 = vmatpush.msra.mxu0 %v517
    %1857 = vmatmul.f32.gmra.mxu0 %v1837
    %v1858 = vpop.f32.mrf.mxu0
    %v1859 = vadd.f32 0.0, %v1858
    %1860 = vmatmul.f32.gmra.mxu0 %v1839
    %v1861 = vpop.f32.mrf.mxu0
    %v1862 = vadd.f32 0.0, %v1861
    %1863 = vdwg.mxu0
    %vm1864 = vcmp.gt.f32.partialorder %v1859, 0.0
    %vm1865 = vcmp.gt.f32.partialorder %v1862, 0.0
    %v1866 = vmin.f32 %v1859, 0.0
    %v1867 = vmin.f32 %v1862, 0.0
    %v1868 = vmul.f32 %v1866, 1.442695
    %v1869 = vpow.pop %v1868
    %v1870 = vmul.f32 %v1867, 1.442695
    %v1871 = vpow.pop %v1870
    %v1872 = vsub.f32 %v1869, 1.0
    %v1873 = vsub.f32 %v1871, 1.0
    %v1874 = vsel %vm1864, %v1859, %v1872
    %v1875 = vsel %vm1865, %v1862, %v1873
    %1876 = vst [vmem:[#allocation5 + $0xa] sm:$0xff] %v1874
    %1877 = vst [vmem:[#allocation5 + $0x12] sm:$0x3] %v1875
    %vm1878 = vcmask 80900
    %v1879 = vsel %vm1878, %v1714, -inf
    %vm1880 = vcmask 78848
    %v1881 = vsel %vm1880, %v1715, -inf
    %v1882 = vmax.f32 %v1879, %v1881
    %v1883 = vrot.slane %v1882, 4
    %v1884 = vmax.f32 %v1882, %v1883
    %v1885 = vrot.slane %v1884, 2
    %v1886 = vmax.f32 %v1884, %v1885
    %v1887 = vrot.slane %v1886, 1
    %v1888 = vmax.f32 %v1886, %v1887
    %v1889 = vsub.f32 %v1714, %v1888
    %v1890 = vsub.f32 %v1715, %v1888
    %v1891 = vmul.f32 %v1889, 1.442695
    %v1892 = vpow.pop %v1891
    %v1893 = vmul.f32 %v1890, 1.442695
    %v1894 = vpow.pop %v1893
    %v1897 = vrot.slane %v1892, 4
    %v1898 = vrot.slane %v1894, 4
    %v1899 = vsel %vm481, %v1897, %v1898
    %v1902 = vsel %vm165, %v1899, 0.0
    %v1903 = vsel %vm1726, %v1898, 0.0
    %v1904 = vadd.f32 %v1902, %v1903
    %v1905 = vrot.slane %v1904, 4
    %v1906 = vadd.f32 %v1904, %v1905
    %v1907 = vrot.slane %v1906, 2
    %v1908 = vadd.f32 %v1906, %v1907
    %v1909 = vrot.slane %v1908, 1
    %v1910 = vadd.f32 %v1908, %v1909
    %v1911 = vrcp.pop %v1910
    %v1912 = vmul.f32 %v1892, %v1911
    %v1913 = vmul.f32 %v1894, %v1911
    %v1916 = vrot.slane %v1912, 4
    %v1917 = vrot.slane %v1913, 4
    %v1918 = vsel %vm481, %v1916, %v1917
    %v1919 = vsel %vm165, %v1918, 0
    %v1921 = vsel %vm165, %v1917, 0
    %1923 = vmatpush.msra.mxu0 0.0
    %1924 = vmatpush.msra.mxu0 0.0
    %1925 = vmatpush.msra.mxu0 0.0
    %1926 = vmatpush.msra.mxu0 0.0
    %1927 = vmatpush.msra.mxu0 0.0
    %1928 = vmatpush.msra.mxu0 0.0
    %1929 = vmatpush.msra.mxu0 0.0
    %1930 = vmatpush.msra.mxu0 0.0
    %1931 = vmatpush.msra.mxu0 0.0
    %1932 = vmatpush.msra.mxu0 0.0
    %1933 = vmatpush.msra.mxu0 0.0
    %1934 = vmatpush.msra.mxu0 0.0
    %1935 = vmatpush.msra.mxu0 0.0
    %1936 = vmatpush.msra.mxu0 0.0
    %1937 = vmatpush.msra.mxu0 %v650
    %1938 = vmatpush.msra.mxu0 %v648
    %1939 = vmatmul.f32.gmra.mxu0 %v1919
    %v1940 = vpop.f32.mrf.mxu0
    %v1941 = vadd.f32 0.0, %v1940
    %1942 = vmatmul.f32.gmra.mxu0 %v1921
    %v1943 = vpop.f32.mrf.mxu0
    %v1944 = vadd.f32 0.0, %v1943
    %1945 = vdwg.mxu0
    %vm1946 = vcmp.gt.f32.partialorder %v1941, 0.0
    %vm1947 = vcmp.gt.f32.partialorder %v1944, 0.0
    %v1948 = vmin.f32 %v1941, 0.0
    %v1949 = vmin.f32 %v1944, 0.0
    %v1950 = vmul.f32 %v1948, 1.442695
    %v1951 = vpow.pop %v1950
    %v1952 = vmul.f32 %v1949, 1.442695
    %v1953 = vpow.pop %v1952
    %v1954 = vsub.f32 %v1951, 1.0
    %v1955 = vsub.f32 %v1953, 1.0
    %v1956 = vsel %vm1946, %v1941, %v1954
    %v1957 = vsel %vm1947, %v1944, %v1955
    %1958 = vst [vmem:[#allocation5 + $0x14] sm:$0xff] %v1956
    %1959 = vst [vmem:[#allocation5 + $0x1c] sm:$0x3] %v1957
    %vm1960 = vcmask 80902
    %v1961 = vsel %vm1960, %v1715, -inf
    %v1962 = vsel %vm165, %v1716, -inf
    %v1963 = vmax.f32 %v1961, %v1962
    %v1964 = vrot.slane %v1963, 4
    %v1965 = vmax.f32 %v1963, %v1964
    %v1966 = vrot.slane %v1965, 2
    %v1967 = vmax.f32 %v1965, %v1966
    %v1968 = vrot.slane %v1967, 1
    %v1969 = vmax.f32 %v1967, %v1968
    %v1970 = vsub.f32 %v1715, %v1969
    %v1971 = vsub.f32 %v1716, %v1969
    %v1972 = vmul.f32 %v1970, 1.442695
    %v1973 = vpow.pop %v1972
    %v1974 = vmul.f32 %v1971, 1.442695
    %v1975 = vpow.pop %v1974
    %v1978 = vrot.slane %v1973, 6
    %v1979 = vrot.slane %v1975, 6
    %v1980 = vsel %vm205, %v1978, %v1979
    %v1983 = vsel %vm165, %v1980, 0.0
    %v1984 = vsel %vm1726, %v1979, 0.0
    %v1985 = vadd.f32 %v1983, %v1984
    %v1986 = vrot.slane %v1985, 4
    %v1987 = vadd.f32 %v1985, %v1986
    %v1988 = vrot.slane %v1987, 2
    %v1989 = vadd.f32 %v1987, %v1988
    %v1990 = vrot.slane %v1989, 1
    %v1991 = vadd.f32 %v1989, %v1990
    %v1992 = vrcp.pop %v1991
    %v1993 = vmul.f32 %v1973, %v1992
    %v1994 = vmul.f32 %v1975, %v1992
    %v1997 = vrot.slane %v1993, 6
    %v1998 = vrot.slane %v1994, 6
    %v1999 = vsel %vm205, %v1997, %v1998
    %v2000 = vsel %vm165, %v1999, 0
    %v2002 = vsel %vm165, %v1998, 0
    %2004 = vmatpush.msra.mxu0 0.0
    %2005 = vmatpush.msra.mxu0 0.0
    %2006 = vmatpush.msra.mxu0 0.0
    %2007 = vmatpush.msra.mxu0 0.0
    %2008 = vmatpush.msra.mxu0 0.0
    %2009 = vmatpush.msra.mxu0 0.0
    %2010 = vmatpush.msra.mxu0 0.0
    %2011 = vmatpush.msra.mxu0 0.0
    %2012 = vmatpush.msra.mxu0 0.0
    %2013 = vmatpush.msra.mxu0 0.0
    %2014 = vmatpush.msra.mxu0 0.0
    %2015 = vmatpush.msra.mxu0 0.0
    %2016 = vmatpush.msra.mxu0 0.0
    %2017 = vmatpush.msra.mxu0 0.0
    %2018 = vmatpush.msra.mxu0 %v781
    %2019 = vmatpush.msra.mxu0 %v779
    %2020 = vmatmul.f32.gmra.mxu0 %v2000
    %v2021 = vpop.f32.mrf.mxu0
    %v2022 = vadd.f32 0.0, %v2021
    %2023 = vmatmul.f32.gmra.mxu0 %v2002
    %v2024 = vpop.f32.mrf.mxu0
    %v2025 = vadd.f32 0.0, %v2024
    %2026 = vdwg.mxu0
    %vm2027 = vcmp.gt.f32.partialorder %v2022, 0.0
    %vm2028 = vcmp.gt.f32.partialorder %v2025, 0.0
    %v2029 = vmin.f32 %v2022, 0.0
    %v2030 = vmin.f32 %v2025, 0.0
    %v2031 = vmul.f32 %v2029, 1.442695
    %v2032 = vpow.pop %v2031
    %v2033 = vmul.f32 %v2030, 1.442695
    %v2034 = vpow.pop %v2033
    %v2035 = vsub.f32 %v2032, 1.0
    %v2036 = vsub.f32 %v2034, 1.0
    %v2037 = vsel %vm2027, %v2022, %v2035
    %v2038 = vsel %vm2028, %v2025, %v2036
    %2039 = vst [vmem:[#allocation5 + $0x1e] sm:$0xff] %v2037
    %2040 = vst [vmem:[#allocation5 + $0x26] sm:$0x3] %v2038
    %v2041 = vsel %vm165, %v1717, -inf
    %v2042 = vsel %vm1726, %v1718, -inf
    %v2043 = vmax.f32 %v2041, %v2042
    %v2044 = vrot.slane %v2043, 4
    %v2045 = vmax.f32 %v2043, %v2044
    %v2046 = vrot.slane %v2045, 2
    %v2047 = vmax.f32 %v2045, %v2046
    %v2048 = vrot.slane %v2047, 1
    %v2049 = vmax.f32 %v2047, %v2048
    %v2050 = vsub.f32 %v1717, %v2049
    %v2051 = vsub.f32 %v1718, %v2049
    %v2052 = vmul.f32 %v2050, 1.442695
    %v2053 = vpow.pop %v2052
    %v2054 = vmul.f32 %v2051, 1.442695
    %v2055 = vpow.pop %v2054
    %v2056 = vsel %vm165, %v2053, 0.0
    %v2057 = vsel %vm1726, %v2055, 0.0
    %v2058 = vadd.f32 %v2056, %v2057
    %v2059 = vrot.slane %v2058, 4
    %v2060 = vadd.f32 %v2058, %v2059
    %v2061 = vrot.slane %v2060, 2
    %v2062 = vadd.f32 %v2060, %v2061
    %v2063 = vrot.slane %v2062, 1
    %v2064 = vadd.f32 %v2062, %v2063
    %v2065 = vrcp.pop %v2064
    %v2066 = vmul.f32 %v2053, %v2065
    %v2067 = vmul.f32 %v2055, %v2065
    %v2069 = vsel %vm165, %v2066, 0
    %v2072 = vsel %vm165, %v2067, 0
    %2074 = vmatpush.msra.mxu0 0.0
    %2075 = vmatpush.msra.mxu0 0.0
    %2076 = vmatpush.msra.mxu0 0.0
    %2077 = vmatpush.msra.mxu0 0.0
    %2078 = vmatpush.msra.mxu0 0.0
    %2079 = vmatpush.msra.mxu0 0.0
    %2080 = vmatpush.msra.mxu0 0.0
    %2081 = vmatpush.msra.mxu0 0.0
    %2082 = vmatpush.msra.mxu0 0.0
    %2083 = vmatpush.msra.mxu0 0.0
    %2084 = vmatpush.msra.mxu0 0.0
    %2085 = vmatpush.msra.mxu0 0.0
    %2086 = vmatpush.msra.mxu0 0.0
    %2087 = vmatpush.msra.mxu0 0.0
    %2088 = vmatpush.msra.mxu0 %v908
    %2089 = vmatpush.msra.mxu0 %v242
    %2090 = vmatmul.f32.gmra.mxu0 %v2069
    %v2091 = vpop.f32.mrf.mxu0
    %v2092 = vadd.f32 0.0, %v2091
    %2093 = vmatmul.f32.gmra.mxu0 %v2072
    %v2094 = vpop.f32.mrf.mxu0
    %v2095 = vadd.f32 0.0, %v2094
    %2096 = vdwg.mxu0
    %vm2097 = vcmp.gt.f32.partialorder %v2092, 0.0
    %vm2098 = vcmp.gt.f32.partialorder %v2095, 0.0
    %v2099 = vmin.f32 %v2092, 0.0
    %v2100 = vmin.f32 %v2095, 0.0
    %v2101 = vmul.f32 %v2099, 1.442695
    %v2102 = vpow.pop %v2101
    %v2103 = vmul.f32 %v2100, 1.442695
    %v2104 = vpow.pop %v2103
    %v2105 = vsub.f32 %v2102, 1.0
    %v2106 = vsub.f32 %v2104, 1.0
    %v2107 = vsel %vm2097, %v2092, %v2105
    %v2108 = vsel %vm2098, %v2095, %v2106
    %2109 = vst [vmem:[#allocation5 + $0x28] sm:$0xff] %v2107
    %2110 = vst [vmem:[#allocation5 + $0x30] sm:$0x3] %v2108
    %v2111 = vsel %vm1796, %v1718, -inf
    %v2112 = vsel %vm1798, %v1719, -inf
    %v2113 = vmax.f32 %v2111, %v2112
    %v2114 = vrot.slane %v2113, 4
    %v2115 = vmax.f32 %v2113, %v2114
    %v2116 = vrot.slane %v2115, 2
    %v2117 = vmax.f32 %v2115, %v2116
    %v2118 = vrot.slane %v2117, 1
    %v2119 = vmax.f32 %v2117, %v2118
    %v2120 = vsub.f32 %v1718, %v2119
    %v2121 = vsub.f32 %v1719, %v2119
    %v2122 = vmul.f32 %v2120, 1.442695
    %v2123 = vpow.pop %v2122
    %v2124 = vmul.f32 %v2121, 1.442695
    %v2125 = vpow.pop %v2124
    %v2128 = vrot.slane %v2123, 2
    %v2129 = vrot.slane %v2125, 2
    %v2130 = vsel %vm514, %v2128, %v2129
    %v2133 = vsel %vm165, %v2130, 0.0
    %v2134 = vsel %vm1726, %v2129, 0.0
    %v2135 = vadd.f32 %v2133, %v2134
    %v2136 = vrot.slane %v2135, 4
    %v2137 = vadd.f32 %v2135, %v2136
    %v2138 = vrot.slane %v2137, 2
    %v2139 = vadd.f32 %v2137, %v2138
    %v2140 = vrot.slane %v2139, 1
    %v2141 = vadd.f32 %v2139, %v2140
    %v2142 = vrcp.pop %v2141
    %v2143 = vmul.f32 %v2123, %v2142
    %v2144 = vmul.f32 %v2125, %v2142
    %v2147 = vrot.slane %v2143, 2
    %v2148 = vrot.slane %v2144, 2
    %v2149 = vsel %vm514, %v2147, %v2148
    %v2150 = vsel %vm165, %v2149, 0
    %v2152 = vsel %vm165, %v2148, 0
    %2154 = vmatpush.msra.mxu0 0.0
    %2155 = vmatpush.msra.mxu0 0.0
    %2156 = vmatpush.msra.mxu0 0.0
    %2157 = vmatpush.msra.mxu0 0.0
    %2158 = vmatpush.msra.mxu0 0.0
    %2159 = vmatpush.msra.mxu0 0.0
    %2160 = vmatpush.msra.mxu0 0.0
    %2161 = vmatpush.msra.mxu0 0.0
    %2162 = vmatpush.msra.mxu0 0.0
    %2163 = vmatpush.msra.mxu0 0.0
    %2164 = vmatpush.msra.mxu0 0.0
    %2165 = vmatpush.msra.mxu0 0.0
    %2166 = vmatpush.msra.mxu0 0.0
    %2167 = vmatpush.msra.mxu0 0.0
    %2168 = vmatpush.msra.mxu0 %v1039
    %2169 = vmatpush.msra.mxu0 %v1037
    %2170 = vmatmul.f32.gmra.mxu0 %v2150
    %v2171 = vpop.f32.mrf.mxu0
    %v2172 = vadd.f32 0.0, %v2171
    %2173 = vmatmul.f32.gmra.mxu0 %v2152
    %v2174 = vpop.f32.mrf.mxu0
    %v2175 = vadd.f32 0.0, %v2174
    %2176 = vdwg.mxu0
    %vm2177 = vcmp.gt.f32.partialorder %v2172, 0.0
    %vm2178 = vcmp.gt.f32.partialorder %v2175, 0.0
    %v2179 = vmin.f32 %v2172, 0.0
    %v2180 = vmin.f32 %v2175, 0.0
    %v2181 = vmul.f32 %v2179, 1.442695
    %v2182 = vpow.pop %v2181
    %v2183 = vmul.f32 %v2180, 1.442695
    %v2184 = vpow.pop %v2183
    %v2185 = vsub.f32 %v2182, 1.0
    %v2186 = vsub.f32 %v2184, 1.0
    %v2187 = vsel %vm2177, %v2172, %v2185
    %v2188 = vsel %vm2178, %v2175, %v2186
    %2189 = vst [vmem:[#allocation5 + $0x32] sm:$0xff] %v2187
    %2190 = vst [vmem:[#allocation5 + $0x3a] sm:$0x3] %v2188
    %v2191 = vsel %vm1878, %v1719, -inf
    %v2192 = vsel %vm1880, %v1720, -inf
    %v2193 = vmax.f32 %v2191, %v2192
    %v2194 = vrot.slane %v2193, 4
    %v2195 = vmax.f32 %v2193, %v2194
    %v2196 = vrot.slane %v2195, 2
    %v2197 = vmax.f32 %v2195, %v2196
    %v2198 = vrot.slane %v2197, 1
    %v2199 = vmax.f32 %v2197, %v2198
    %v2200 = vsub.f32 %v1719, %v2199
    %v2201 = vsub.f32 %v1720, %v2199
    %v2202 = vmul.f32 %v2200, 1.442695
    %v2203 = vpow.pop %v2202
    %v2204 = vmul.f32 %v2201, 1.442695
    %v2205 = vpow.pop %v2204
    %v2208 = vrot.slane %v2203, 4
    %v2209 = vrot.slane %v2205, 4
    %v2210 = vsel %vm481, %v2208, %v2209
    %v2213 = vsel %vm165, %v2210, 0.0
    %v2214 = vsel %vm1726, %v2209, 0.0
    %v2215 = vadd.f32 %v2213, %v2214
    %v2216 = vrot.slane %v2215, 4
    %v2217 = vadd.f32 %v2215, %v2216
    %v2218 = vrot.slane %v2217, 2
    %v2219 = vadd.f32 %v2217, %v2218
    %v2220 = vrot.slane %v2219, 1
    %v2221 = vadd.f32 %v2219, %v2220
    %v2222 = vrcp.pop %v2221
    %v2223 = vmul.f32 %v2203, %v2222
    %v2224 = vmul.f32 %v2205, %v2222
    %v2227 = vrot.slane %v2223, 4
    %v2228 = vrot.slane %v2224, 4
    %v2229 = vsel %vm481, %v2227, %v2228
    %v2230 = vsel %vm165, %v2229, 0
    %v2232 = vsel %vm165, %v2228, 0
    %2234 = vmatpush.msra.mxu0 0.0
    %2235 = vmatpush.msra.mxu0 0.0
    %2236 = vmatpush.msra.mxu0 0.0
    %2237 = vmatpush.msra.mxu0 0.0
    %2238 = vmatpush.msra.mxu0 0.0
    %2239 = vmatpush.msra.mxu0 0.0
    %2240 = vmatpush.msra.mxu0 0.0
    %2241 = vmatpush.msra.mxu0 0.0
    %2242 = vmatpush.msra.mxu0 0.0
    %2243 = vmatpush.msra.mxu0 0.0
    %2244 = vmatpush.msra.mxu0 0.0
    %2245 = vmatpush.msra.mxu0 0.0
    %2246 = vmatpush.msra.mxu0 0.0
    %2247 = vmatpush.msra.mxu0 0.0
    %2248 = vmatpush.msra.mxu0 %v1170
    %2249 = vmatpush.msra.mxu0 %v1168
    %2250 = vmatmul.f32.gmra.mxu0 %v2230
    %v2251 = vpop.f32.mrf.mxu0
    %v2252 = vadd.f32 0.0, %v2251
    %2253 = vmatmul.f32.gmra.mxu0 %v2232
    %v2254 = vpop.f32.mrf.mxu0
    %v2255 = vadd.f32 0.0, %v2254
    %2256 = vdwg.mxu0
    %vm2257 = vcmp.gt.f32.partialorder %v2252, 0.0
    %vm2258 = vcmp.gt.f32.partialorder %v2255, 0.0
    %v2259 = vmin.f32 %v2252, 0.0
    %v2260 = vmin.f32 %v2255, 0.0
    %v2261 = vmul.f32 %v2259, 1.442695
    %v2262 = vpow.pop %v2261
    %v2263 = vmul.f32 %v2260, 1.442695
    %v2264 = vpow.pop %v2263
    %v2265 = vsub.f32 %v2262, 1.0
    %v2266 = vsub.f32 %v2264, 1.0
    %v2267 = vsel %vm2257, %v2252, %v2265
    %v2268 = vsel %vm2258, %v2255, %v2266
    %2269 = vst [vmem:[#allocation5 + $0x3c] sm:$0xff] %v2267
    %2270 = vst [vmem:[#allocation5 + $0x44] sm:$0x3] %v2268
    %v2271 = vsel %vm1960, %v1720, -inf
    %v2272 = vsel %vm165, %v1721, -inf
    %v2273 = vmax.f32 %v2271, %v2272
    %v2274 = vrot.slane %v2273, 4
    %v2275 = vmax.f32 %v2273, %v2274
    %v2276 = vrot.slane %v2275, 2
    %v2277 = vmax.f32 %v2275, %v2276
    %v2278 = vrot.slane %v2277, 1
    %v2279 = vmax.f32 %v2277, %v2278
    %v2280 = vsub.f32 %v1720, %v2279
    %v2281 = vsub.f32 %v1721, %v2279
    %v2282 = vmul.f32 %v2280, 1.442695
    %v2283 = vpow.pop %v2282
    %v2284 = vmul.f32 %v2281, 1.442695
    %v2285 = vpow.pop %v2284
    %v2288 = vrot.slane %v2283, 6
    %v2289 = vrot.slane %v2285, 6
    %v2290 = vsel %vm205, %v2288, %v2289
    %v2293 = vsel %vm165, %v2290, 0.0
    %v2294 = vsel %vm1726, %v2289, 0.0
    %v2295 = vadd.f32 %v2293, %v2294
    %v2296 = vrot.slane %v2295, 4
    %v2297 = vadd.f32 %v2295, %v2296
    %v2298 = vrot.slane %v2297, 2
    %v2299 = vadd.f32 %v2297, %v2298
    %v2300 = vrot.slane %v2299, 1
    %v2301 = vadd.f32 %v2299, %v2300
    %v2302 = vrcp.pop %v2301
    %v2303 = vmul.f32 %v2283, %v2302
    %v2304 = vmul.f32 %v2285, %v2302
    %v2307 = vrot.slane %v2303, 6
    %v2308 = vrot.slane %v2304, 6
    %v2309 = vsel %vm205, %v2307, %v2308
    %v2310 = vsel %vm165, %v2309, 0
    %v2312 = vsel %vm165, %v2308, 0
    %2314 = vmatpush.msra.mxu0 0.0
    %2315 = vmatpush.msra.mxu0 0.0
    %2316 = vmatpush.msra.mxu0 0.0
    %2317 = vmatpush.msra.mxu0 0.0
    %2318 = vmatpush.msra.mxu0 0.0
    %2319 = vmatpush.msra.mxu0 0.0
    %2320 = vmatpush.msra.mxu0 0.0
    %2321 = vmatpush.msra.mxu0 0.0
    %2322 = vmatpush.msra.mxu0 0.0
    %2323 = vmatpush.msra.mxu0 0.0
    %2324 = vmatpush.msra.mxu0 0.0
    %2325 = vmatpush.msra.mxu0 0.0
    %2326 = vmatpush.msra.mxu0 0.0
    %2327 = vmatpush.msra.mxu0 0.0
    %2328 = vmatpush.msra.mxu0 %v1301
    %2329 = vmatpush.msra.mxu0 %v1299
    %2330 = vmatmul.f32.gmra.mxu0 %v2310
    %v2331 = vpop.f32.mrf.mxu0
    %v2332 = vadd.f32 0.0, %v2331
    %2333 = vmatmul.f32.gmra.mxu0 %v2312
    %v2334 = vpop.f32.mrf.mxu0
    %v2335 = vadd.f32 0.0, %v2334
    %2336 = vdwg.mxu0
    %vm2337 = vcmp.gt.f32.partialorder %v2332, 0.0
    %vm2338 = vcmp.gt.f32.partialorder %v2335, 0.0
    %v2339 = vmin.f32 %v2332, 0.0
    %v2340 = vmin.f32 %v2335, 0.0
    %v2341 = vmul.f32 %v2339, 1.442695
    %v2342 = vpow.pop %v2341
    %v2343 = vmul.f32 %v2340, 1.442695
    %v2344 = vpow.pop %v2343
    %v2345 = vsub.f32 %v2342, 1.0
    %v2346 = vsub.f32 %v2344, 1.0
    %v2347 = vsel %vm2337, %v2332, %v2345
    %v2348 = vsel %vm2338, %v2335, %v2346
    %2349 = vst [vmem:[#allocation5 + $0x46] sm:$0xff] %v2347
    %2350 = vst [vmem:[#allocation5 + $0x4e] sm:$0x3] %v2348
    %v2351 = vsel %vm165, %v1722, -inf
    %v2352 = vsel %vm1726, %v1723, -inf
    %v2353 = vmax.f32 %v2351, %v2352
    %v2354 = vrot.slane %v2353, 4
    %v2355 = vmax.f32 %v2353, %v2354
    %v2356 = vrot.slane %v2355, 2
    %v2357 = vmax.f32 %v2355, %v2356
    %v2358 = vrot.slane %v2357, 1
    %v2359 = vmax.f32 %v2357, %v2358
    %v2360 = vsub.f32 %v1722, %v2359
    %v2361 = vsub.f32 %v1723, %v2359
    %v2362 = vmul.f32 %v2360, 1.442695
    %v2363 = vpow.pop %v2362
    %v2364 = vmul.f32 %v2361, 1.442695
    %v2365 = vpow.pop %v2364
    %v2366 = vsel %vm165, %v2363, 0.0
    %v2367 = vsel %vm1726, %v2365, 0.0
    %v2368 = vadd.f32 %v2366, %v2367
    %v2369 = vrot.slane %v2368, 4
    %v2370 = vadd.f32 %v2368, %v2369
    %v2371 = vrot.slane %v2370, 2
    %v2372 = vadd.f32 %v2370, %v2371
    %v2373 = vrot.slane %v2372, 1
    %v2374 = vadd.f32 %v2372, %v2373
    %v2375 = vrcp.pop %v2374
    %v2376 = vmul.f32 %v2363, %v2375
    %v2377 = vmul.f32 %v2365, %v2375
    %v2379 = vsel %vm165, %v2376, 0
    %v2382 = vsel %vm165, %v2377, 0
    %2384 = vmatpush.msra.mxu0 0.0
    %2385 = vmatpush.msra.mxu0 0.0
    %2386 = vmatpush.msra.mxu0 0.0
    %2387 = vmatpush.msra.mxu0 0.0
    %2388 = vmatpush.msra.mxu0 0.0
    %2389 = vmatpush.msra.mxu0 0.0
    %2390 = vmatpush.msra.mxu0 0.0
    %2391 = vmatpush.msra.mxu0 0.0
    %2392 = vmatpush.msra.mxu0 0.0
    %2393 = vmatpush.msra.mxu0 0.0
    %2394 = vmatpush.msra.mxu0 0.0
    %2395 = vmatpush.msra.mxu0 0.0
    %2396 = vmatpush.msra.mxu0 0.0
    %2397 = vmatpush.msra.mxu0 0.0
    %2398 = vmatpush.msra.mxu0 %v1428
    %2399 = vmatpush.msra.mxu0 %v257
    %2400 = vmatmul.f32.gmra.mxu0 %v2379
    %v2401 = vpop.f32.mrf.mxu0
    %v2402 = vadd.f32 0.0, %v2401
    %2403 = vmatmul.f32.gmra.mxu0 %v2382
    %v2404 = vpop.f32.mrf.mxu0
    %v2405 = vadd.f32 0.0, %v2404
    %2406 = vdwg.mxu0
    %vm2407 = vcmp.gt.f32.partialorder %v2402, 0.0
    %vm2408 = vcmp.gt.f32.partialorder %v2405, 0.0
    %v2409 = vmin.f32 %v2402, 0.0
    %v2410 = vmin.f32 %v2405, 0.0
    %v2411 = vmul.f32 %v2409, 1.442695
    %v2412 = vpow.pop %v2411
    %v2413 = vmul.f32 %v2410, 1.442695
    %v2414 = vpow.pop %v2413
    %v2415 = vsub.f32 %v2412, 1.0
    %v2416 = vsub.f32 %v2414, 1.0
    %v2417 = vsel %vm2407, %v2402, %v2415
    %v2418 = vsel %vm2408, %v2405, %v2416
    %2419 = vst [vmem:[#allocation5 + $0x50] sm:$0xff] %v2417
    %2420 = vst [vmem:[#allocation5 + $0x58] sm:$0x3] %v2418
    %v2421 = vsel %vm1796, %v1723, -inf
    %v2422 = vsel %vm1798, %v1724, -inf
    %v2423 = vmax.f32 %v2421, %v2422
    %v2424 = vrot.slane %v2423, 4
    %v2425 = vmax.f32 %v2423, %v2424
    %v2426 = vrot.slane %v2425, 2
    %v2427 = vmax.f32 %v2425, %v2426
    %v2428 = vrot.slane %v2427, 1
    %v2429 = vmax.f32 %v2427, %v2428
    %v2430 = vsub.f32 %v1723, %v2429
    %v2431 = vsub.f32 %v1724, %v2429
    %v2432 = vmul.f32 %v2430, 1.442695
    %v2433 = vpow.pop %v2432
    %v2434 = vmul.f32 %v2431, 1.442695
    %v2435 = vpow.pop %v2434
    %v2438 = vrot.slane %v2433, 2
    %v2439 = vrot.slane %v2435, 2
    %v2440 = vsel %vm514, %v2438, %v2439
    %v2443 = vsel %vm165, %v2440, 0.0
    %v2444 = vsel %vm1726, %v2439, 0.0
    %v2445 = vadd.f32 %v2443, %v2444
    %v2446 = vrot.slane %v2445, 4
    %v2447 = vadd.f32 %v2445, %v2446
    %v2448 = vrot.slane %v2447, 2
    %v2449 = vadd.f32 %v2447, %v2448
    %v2450 = vrot.slane %v2449, 1
    %v2451 = vadd.f32 %v2449, %v2450
    %v2452 = vrcp.pop %v2451
    %v2453 = vmul.f32 %v2433, %v2452
    %v2454 = vmul.f32 %v2435, %v2452
    %v2457 = vrot.slane %v2453, 2
    %v2458 = vrot.slane %v2454, 2
    %v2459 = vsel %vm514, %v2457, %v2458
    %v2460 = vsel %vm165, %v2459, 0
    %v2462 = vsel %vm165, %v2458, 0
    %2464 = vmatpush.msra.mxu0 0.0
    %2465 = vmatpush.msra.mxu0 0.0
    %2466 = vmatpush.msra.mxu0 0.0
    %2467 = vmatpush.msra.mxu0 0.0
    %2468 = vmatpush.msra.mxu0 0.0
    %2469 = vmatpush.msra.mxu0 0.0
    %2470 = vmatpush.msra.mxu0 0.0
    %2471 = vmatpush.msra.mxu0 0.0
    %2472 = vmatpush.msra.mxu0 0.0
    %2473 = vmatpush.msra.mxu0 0.0
    %2474 = vmatpush.msra.mxu0 0.0
    %2475 = vmatpush.msra.mxu0 0.0
    %2476 = vmatpush.msra.mxu0 0.0
    %2477 = vmatpush.msra.mxu0 0.0
    %2478 = vmatpush.msra.mxu0 %v1559
    %2479 = vmatpush.msra.mxu0 %v1557
    %2480 = vmatmul.f32.gmra.mxu0 %v2460
    %v2481 = vpop.f32.mrf.mxu0
    %v2482 = vadd.f32 0.0, %v2481
    %2483 = vmatmul.f32.gmra.mxu0 %v2462
    %v2484 = vpop.f32.mrf.mxu0
    %v2485 = vadd.f32 0.0, %v2484
    %2486 = vdwg.mxu0
    %vm2487 = vcmp.gt.f32.partialorder %v2482, 0.0
    %vm2488 = vcmp.gt.f32.partialorder %v2485, 0.0
    %v2489 = vmin.f32 %v2482, 0.0
    %v2490 = vmin.f32 %v2485, 0.0
    %v2491 = vmul.f32 %v2489, 1.442695
    %v2492 = vpow.pop %v2491
    %v2493 = vmul.f32 %v2490, 1.442695
    %v2494 = vpow.pop %v2493
    %v2495 = vsub.f32 %v2492, 1.0
    %v2496 = vsub.f32 %v2494, 1.0
    %v2497 = vsel %vm2487, %v2482, %v2495
    %v2498 = vsel %vm2488, %v2485, %v2496
    %2499 = vst [vmem:[#allocation5 + $0x5a] sm:$0xff] %v2497
    %2500 = vst [vmem:[#allocation5 + $0x62] sm:$0x3] %v2498
    // Predicated region
    $region18: #{tpu_custom_call.1} parent=1 // pred_check
      _
    $region19: #{tpu_custom_call.1} parent=1 // pred_check_branch
      %2502 = sbr.rel (0) target = $region21
    $region20: #{tpu_custom_call.1} parent=1 // pred_region
      %2504 = vsyncadd [#allocation4], 0
      %s2505 = sshll.u32 [#allocation5], 4
      %s2506 = int_to_ptr.vmem [resolvable:$true] %s2505
      %s2507 = sshll.u32 %s3, 4
      %s2508 = int_to_ptr.hbm [resolvable:$true] %s2507
      %2513 = dma.vmem_to_hbm [thread:$0]  %s2506, 1664, %s2508, [#allocation4], 128, 128, 8
    $region21: #{tpu_custom_call.1} parent=1 // pred_fallthru
      _
    // Predicated region
    $region22: #{tpu_custom_call.1} parent=1 // pred_check
      _
    $region23: #{tpu_custom_call.1} parent=1 // pred_check_branch
      %2515 = sbr.rel (0) target = $region25
    $region24: #{tpu_custom_call.1} parent=1 // pred_region
      %2517 = dma.done [#allocation4], 1664
    $region25: #{tpu_custom_call.1} parent=1 // pred_fallthru
      _
    %2518 = vsyncpa [#allocation3], 1
    %2519 = vsyncpa [#allocation4], 1

</llo_original>
